<compile_context>
chip_gen: v5e
topology: v5e:2x2
jax: 0.10.0
libtpu: 0.0.40
codegen_flags: <defaults>
</compile_context>

<pallas_src>
import jax
import jax.numpy as jnp
from jax.experimental import pallas as pl
from jax.experimental.pallas import tpu as pltpu

BN_EPS = 1e-5
LANE = 128


def _round_up(a, m):
    return (a + m - 1) // m * m


# ----------------------------------------------------------------------------
# Pallas kernel: whole bottleneck block for NB batch images per grid step.
# ----------------------------------------------------------------------------
def _bottleneck_kernel(x_ref, w1_ref, w2_ref, w3_ref, b1_ref, b2_ref, b3_ref,
                       o_ref, pad_ref):
    # x_ref:  (NB, H, W, Cp)    f32
    # w1_ref: (Cp, Pp)          bf16  (BN1 scale folded in)
    # w2_ref: (3, 3*Pp, Pp)     bf16  (ky taps stacked along K, per kx; BN2 folded)
    # w3_ref: (Pp, Cp)          bf16  (BN3 scale folded in)
    # b*_ref: (1, C)            f32   folded BN biases
    # o_ref:  (NB, H, W, Cp)    f32
    # pad_ref:(NB, H+2, Wp, Pp) f32   zero-bordered stage-1 activations
    NB, H, W, Cp = x_ref.shape
    _, _, Wp, Pp = pad_ref.shape
    M = NB * H * Wp
    f32 = jnp.float32
    bf16 = jnp.bfloat16

    # ---- conv1 (1x1) + bn1 + relu  (bf16 MXU operands, f32 accum) -----------
    x2d = x_ref[...].reshape(NB * H * W, Cp)
    h1 = jnp.dot(x2d.astype(bf16), w1_ref[...], preferred_element_type=f32)
    h1 = jnp.maximum(h1 + b1_ref[...], 0.0)                    # (NB*H*W, Pp)

    # ---- write h1 into the zero-bordered pad scratch -------------------------
    # Border rows/cols are small zero stores every step (megacore-safe); the
    # interior is written exactly once (no full-scratch zero + rewrite).
    pad_ref[:, 0:1, :, :] = jnp.zeros((NB, 1, Wp, Pp), f32)
    pad_ref[:, H + 1:H + 2, :, :] = jnp.zeros((NB, 1, Wp, Pp), f32)
    pad_ref[:, 1:H + 1, 0:1, :] = jnp.zeros((NB, H, 1, Pp), f32)
    pad_ref[:, 1:H + 1, W + 1:Wp, :] = jnp.zeros((NB, H, Wp - W - 1, Pp), f32)
    pad_ref[:, 1:H + 1, 1:W + 1, :] = h1.reshape(NB, H, W, Pp)

    # ---- conv2 (3x3, stride 1, pad 1) + bn2 + relu ---------------------------
    # ky taps fused into K via a lane-concat of 3 row-shifted views (leading-dim
    # slices, no strided copies); kx taps handled by rolling the matmul result
    # by +/-1 rows (XLU) instead of materializing shifted windows.
    rows = jnp.concatenate(
        [pad_ref[:, ky:ky + H, :, :] for ky in range(3)], axis=-1)
    rf = rows.reshape(M, 3 * Pp).astype(bf16)                   # (M, 3Pp)

    acc = jnp.zeros((M, Pp), f32)
    for kx in range(3):
        y = jnp.dot(rf, w2_ref[kx], preferred_element_type=f32)  # (M, Pp)
        shift = (1 - kx) % M                                     # +1, 0, M-1
        if shift:
            y = pltpu.roll(y, shift, 0)
        acc = acc + y
    # Keep only the real output columns (drop left/right W padding).
    h2 = acc.reshape(NB, H, Wp, Pp)[:, :, 1:W + 1, :].reshape(NB * H * W, Pp)
    h2 = jnp.maximum(h2 + b2_ref[...], 0.0)

    # ---- conv3 (1x1) + bn3 + residual + relu ---------------------------------
    h3 = jnp.dot(h2.astype(bf16), w3_ref[...], preferred_element_type=f32)
    h3 = h3 + b3_ref[...]
    # Re-read the residual here (short live range) instead of keeping x2d live.
    x_res = x_ref[...].reshape(NB * H * W, Cp)
    o_ref[...] = jnp.maximum(h3 + x_res, 0.0).reshape(NB, H, W, Cp)


# ----------------------------------------------------------------------------
# Wrapper: NCHW <-> NHWC, BN folding, channel padding, pallas_call setup.
# ----------------------------------------------------------------------------
def bottleneck_forward(x_nchw, params, *, batch_block=None):
    f32, bf16 = jnp.float32, jnp.bfloat16
    x = jnp.transpose(x_nchw, (0, 2, 3, 1)).astype(f32)          # NHWC
    N, H, W, Cin = x.shape

    w1 = jnp.transpose(params["conv1_w"][:, :, 0, 0], (1, 0))    # (Cin, P)
    P = w1.shape[1]
    w3 = jnp.transpose(params["conv3_w"][:, :, 0, 0], (1, 0))    # (P, Cout)
    Cout = w3.shape[1]
    assert Cout == Cin, "residual add requires inplanes == planes*4 (no downsample)"
    w2 = jnp.transpose(params["conv2_w"], (2, 3, 1, 0))          # (ky,kx,Cin=P,Cout=P)

    # Fold eval-mode BN: scale goes into the conv weights, only bias remains.
    def fold_bn(g, b, m, v):
        s = g / jnp.sqrt(v + BN_EPS)
        return s.astype(f32), (b - m * s).astype(f32)

    s1, b1 = fold_bn(params["bn1_g"], params["bn1_b"], params["bn1_m"], params["bn1_v"])
    s2, b2 = fold_bn(params["bn2_g"], params["bn2_b"], params["bn2_m"], params["bn2_v"])
    s3, b3 = fold_bn(params["bn3_g"], params["bn3_b"], params["bn3_m"], params["bn3_v"])
    w1 = w1 * s1[None, :]
    w2 = w2 * s2[None, None, None, :]
    w3 = w3 * s3[None, :]

    # Pad every channel axis to a multiple of 128 lanes. Padded channels carry
    # exact zeros through the whole block (zero weights + zero biases), so
    # slicing at the end recovers the result.
    Cp = _round_up(Cin, LANE)
    Pp = _round_up(P, LANE)
    xp = jnp.zeros((N, H, W, Cp), f32).at[..., :Cin].set(x)
    w1p = jnp.zeros((Cp, Pp), f32).at[:Cin, :P].set(w1)
    w3p = jnp.zeros((Pp, Cp), f32).at[:P, :Cout].set(w3)
    w2p = jnp.zeros((3, 3, Pp, Pp), f32).at[:, :, :P, :P].set(w2)
    # Stack the 3 ky taps along K for each kx: (3, 3*Pp, Pp).
    w2s = jnp.stack(
        [jnp.concatenate([w2p[0, kx], w2p[1, kx], w2p[2, kx]], axis=0)
         for kx in range(3)], axis=0)
    b1p = jnp.zeros((1, Pp), f32).at[0, :P].set(b1)
    b2p = jnp.zeros((1, Pp), f32).at[0, :P].set(b2)
    b3p = jnp.zeros((1, Cp), f32).at[0, :Cout].set(b3)
    # MXU operands in bf16; accumulation and epilogues stay f32 in-kernel.
    w1p, w2s, w3p = w1p.astype(bf16), w2s.astype(bf16), w3p.astype(bf16)

    # Process NB images per grid step so the 1x1 convs get a tall M; fall back
    # to 1 image/step for large spatial extents.
    if batch_block is None:
        batch_block = max(1, min(N, 512 // (H * W)))
    while N % batch_block:
        batch_block -= 1
    NB = batch_block

    Wp = _round_up(W + 2, 8)     # W + halo, rounded to 8 sublanes (layout-preserving reshapes)

    grid_spec = pltpu.PrefetchScalarGridSpec(
        num_scalar_prefetch=0,
        grid=(N // NB,),
        in_specs=[
            pl.BlockSpec((NB, H, W, Cp), lambda n: (n, 0, 0, 0)),
            pl.BlockSpec((Cp, Pp), lambda n: (0, 0)),
            pl.BlockSpec((3, 3 * Pp, Pp), lambda n: (0, 0, 0)),
            pl.BlockSpec((Pp, Cp), lambda n: (0, 0)),
            pl.BlockSpec((1, Pp), lambda n: (0, 0)),
            pl.BlockSpec((1, Pp), lambda n: (0, 0)),
            pl.BlockSpec((1, Cp), lambda n: (0, 0)),
        ],
        out_specs=pl.BlockSpec((NB, H, W, Cp), lambda n: (n, 0, 0, 0)),
        scratch_shapes=[pltpu.VMEM((NB, H + 2, Wp, Pp), jnp.float32)],
    )

    out = pl.pallas_call(
        _bottleneck_kernel,
        out_shape=jax.ShapeDtypeStruct((N, H, W, Cp), jnp.float32),
        grid_spec=grid_spec,
        compiler_params=pltpu.CompilerParams(
            dimension_semantics=("parallel",),
            vmem_limit_bytes=32 * 1024 * 1024),
    )(xp, w1p, w2s, w3p, b1p, b2p, b3p)

    out = out[..., :Cout]                                       # drop lane padding
    return jnp.transpose(out, (0, 3, 1, 2))                     # back to NCHW


# ----------------------------------------------------------------------------
# Pure-JAX reference (mirrors the PyTorch forward, eval-mode BN, NCHW, f32).
# ----------------------------------------------------------------------------
def _conv2d_nchw(x, w, stride=1, padding=0):
    return jax.lax.conv_general_dilated(
        x, w, window_strides=(stride, stride),
        padding=((padding, padding), (padding, padding)),
        dimension_numbers=("NCHW", "OIHW", "NCHW"))


def _bn_nchw(x, g, b, m, v):
    g = g.reshape(1, -1, 1, 1)
    b = b.reshape(1, -1, 1, 1)
    m = m.reshape(1, -1, 1, 1)
    v = v.reshape(1, -1, 1, 1)
    return (x - m) / jnp.sqrt(v + BN_EPS) * g + b


def bottleneck_reference(x, p):
    residual = x
    out = _conv2d_nchw(x, p["conv1_w"])
    out = jnp.maximum(_bn_nchw(out, p["bn1_g"], p["bn1_b"], p["bn1_m"], p["bn1_v"]), 0.0)
    out = _conv2d_nchw(out, p["conv2_w"], stride=1, padding=1)
    out = jnp.maximum(_bn_nchw(out, p["bn2_g"], p["bn2_b"], p["bn2_m"], p["bn2_v"]), 0.0)
    out = _conv2d_nchw(out, p["conv3_w"])
    out = _bn_nchw(out, p["bn3_g"], p["bn3_b"], p["bn3_m"], p["bn3_v"])
    return jnp.maximum(out + residual, 0.0)


# ----------------------------------------------------------------------------
# Deterministic parameter construction (shapes from Bottleneck.__init__).
# ----------------------------------------------------------------------------
def make_params(key, inplanes, planes):
    expansion = 4
    ks = jax.random.split(key, 12)
    f32 = jnp.float32
    p = {
        "conv1_w": 0.1 * jax.random.normal(ks[0], (planes, inplanes, 1, 1), f32),
        "conv2_w": 0.1 * jax.random.normal(ks[1], (planes, planes, 3, 3), f32),
        "conv3_w": 0.1 * jax.random.normal(ks[2], (planes * expansion, planes, 1, 1), f32),
        "bn1_g": 1.0 + 0.1 * jax.random.normal(ks[3], (planes,), f32),
        "bn1_b": 0.1 * jax.random.normal(ks[4], (planes,), f32),
        "bn1_m": 0.05 * jax.random.normal(ks[5], (planes,), f32),
        "bn1_v": 1.0 + 0.1 * jax.random.uniform(ks[6], (planes,), f32),
        "bn2_g": 1.0 + 0.1 * jax.random.normal(ks[7], (planes,), f32),
        "bn2_b": 0.1 * jax.random.normal(ks[8], (planes,), f32),
        "bn2_m": 0.05 * jax.random.normal(ks[9], (planes,), f32),
        "bn2_v": 1.0 + 0.1 * jax.random.uniform(ks[10], (planes,), f32),
        "bn3_g": 1.0 + 0.1 * jax.random.normal(ks[11], (planes * expansion,), f32),
        "bn3_b": jnp.linspace(-0.1, 0.1, planes * expansion, dtype=f32),
        "bn3_m": jnp.linspace(-0.05, 0.05, planes * expansion, dtype=f32),
        "bn3_v": jnp.linspace(0.9, 1.1, planes * expansion, dtype=f32),
    }
    return p


if __name__ == "__main__":
    # inplanes = planes * expansion so the identity residual adds without a
    # downsample branch (downsample=None, stride=1 path of the module).
    inplanes, planes = 16, 4
    N, H, W = 2, 8, 8

    key = jax.random.PRNGKey(0)
    kx_, kp = jax.random.split(key)
    x = jax.random.normal(kx_, (N, inplanes, H, W), jnp.float32)   # NCHW like PyTorch
    params = make_params(kp, inplanes, planes)

    out = jax.block_until_ready(bottleneck_forward(x, params))
    ref = jax.block_until_ready(bottleneck_reference(x, params))

    assert out.shape == ref.shape == (N, inplanes, H, W)
    err = float(jnp.max(jnp.abs(out - ref)))
    # bf16 MXU operands with f32 accumulation / f32 epilogues: loosen tolerance.
    assert err < 2e-2, f"Pallas output mismatch vs JAX reference (max abs err {err})"

    print("KERNEL_OK")
</pallas_src>

<mosaic_0001>
module attributes {stable_mosaic.version = 11 : i64} {
  func.func @_bottleneck_kernel(%arg0: i32, %arg1: memref<2x8x8x128xf32, #tpu.memory_space<vmem>>, %arg2: memref<128x128xbf16, #tpu.memory_space<vmem>>, %arg3: memref<3x384x128xbf16, #tpu.memory_space<vmem>>, %arg4: memref<128x128xbf16, #tpu.memory_space<vmem>>, %arg5: memref<1x128xf32, #tpu.memory_space<vmem>>, %arg6: memref<1x128xf32, #tpu.memory_space<vmem>>, %arg7: memref<1x128xf32, #tpu.memory_space<vmem>>, %arg8: memref<2x8x8x128xf32, #tpu.memory_space<vmem>>, %arg9: memref<2x10x16x128xf32, #tpu.memory_space<vmem>>) attributes {dimension_semantics = [#tpu.dimension_semantics<parallel>], iteration_bounds = array<i64: 1>, scalar_prefetch = 0 : i64, scratch_operands = 1 : i64, tpu.core_type = #tpu.core_type<tc>, window_params = [{transform_indices = @transform_0, window_bounds = array<i64: 2, 8, 8, 128>}, {pipeline_mode = #tpu.pipeline_mode<synchronous>, transform_indices = @transform_1, window_bounds = array<i64: 128, 128>}, {pipeline_mode = #tpu.pipeline_mode<synchronous>, transform_indices = @transform_2, window_bounds = array<i64: 3, 384, 128>}, {pipeline_mode = #tpu.pipeline_mode<synchronous>, transform_indices = @transform_3, window_bounds = array<i64: 128, 128>}, {pipeline_mode = #tpu.pipeline_mode<synchronous>, transform_indices = @transform_4, window_bounds = array<i64: 1, 128>}, {pipeline_mode = #tpu.pipeline_mode<synchronous>, transform_indices = @transform_5, window_bounds = array<i64: 1, 128>}, {pipeline_mode = #tpu.pipeline_mode<synchronous>, transform_indices = @transform_6, window_bounds = array<i64: 1, 128>}, {transform_indices = @transform_7, window_bounds = array<i64: 2, 8, 8, 128>}]} {
    %c0 = arith.constant 0 : index
    %c0_0 = arith.constant 0 : index
    %c0_1 = arith.constant 0 : index
    %c0_2 = arith.constant 0 : index
    %0 = vector.load %arg1[%c0, %c0_0, %c0_1, %c0_2] : memref<2x8x8x128xf32, #tpu.memory_space<vmem>>, vector<2x8x8x128xf32>
    %1 = vector.shape_cast %0 : vector<2x8x8x128xf32> to vector<128x128xf32>
    %2 = arith.truncf %1 : vector<128x128xf32> to vector<128x128xbf16>
    %c0_3 = arith.constant 0 : index
    %c0_4 = arith.constant 0 : index
    %3 = vector.load %arg2[%c0_3, %c0_4] : memref<128x128xbf16, #tpu.memory_space<vmem>>, vector<128x128xbf16>
    %cst = arith.constant dense<0.000000e+00> : vector<128x128xf32>
    %4 = tpu.matmul %2, %3, %cst {dimension_numbers = #tpu.dot_dimension_numbers<[1], [0], [0], [1], [0, 0, 1, 1], [], []>} : vector<128x128xbf16>, vector<128x128xbf16>, vector<128x128xf32> -> vector<128x128xf32>
    %c0_5 = arith.constant 0 : index
    %c0_6 = arith.constant 0 : index
    %5 = vector.load %arg5[%c0_5, %c0_6] : memref<1x128xf32, #tpu.memory_space<vmem>>, vector<1x128xf32>
    %6 = vector.broadcast %5 : vector<1x128xf32> to vector<128x128xf32>
    %7 = arith.addf %4, %6 : vector<128x128xf32>
    %cst_7 = arith.constant 0.000000e+00 : f32
    %8 = vector.broadcast %cst_7 : f32 to vector<128x128xf32>
    %9 = arith.maximumf %7, %8 : vector<128x128xf32>
    %cst_8 = arith.constant 0.000000e+00 : f32
    %10 = vector.broadcast %cst_8 : f32 to vector<2x1x16x128xf32>
    %c0_9 = arith.constant 0 : index
    %c0_10 = arith.constant 0 : index
    %c0_11 = arith.constant 0 : index
    %c0_12 = arith.constant 0 : index
    %11 = vector.load %arg9[%c0_9, %c0_10, %c0_11, %c0_12] : memref<2x10x16x128xf32, #tpu.memory_space<vmem>>, vector<2x1x16x128xf32>
    tpu.vector_store %arg9[%c0_9, %c0_10, %c0_11, %c0_12], %10 {strides = array<i32>} : memref<2x10x16x128xf32, #tpu.memory_space<vmem>>, vector<2x1x16x128xf32>,
    %cst_13 = arith.constant 0.000000e+00 : f32
    %12 = vector.broadcast %cst_13 : f32 to vector<2x1x16x128xf32>
    %c0_14 = arith.constant 0 : index
    %c9 = arith.constant 9 : index
    %c0_15 = arith.constant 0 : index
    %c0_16 = arith.constant 0 : index
    %13 = vector.load %arg9[%c0_14, %c9, %c0_15, %c0_16] : memref<2x10x16x128xf32, #tpu.memory_space<vmem>>, vector<2x1x16x128xf32>
    tpu.vector_store %arg9[%c0_14, %c9, %c0_15, %c0_16], %12 {strides = array<i32>} : memref<2x10x16x128xf32, #tpu.memory_space<vmem>>, vector<2x1x16x128xf32>,
    %cst_17 = arith.constant 0.000000e+00 : f32
    %14 = vector.broadcast %cst_17 : f32 to vector<2x8x1x128xf32>
    %c0_18 = arith.constant 0 : index
    %c1 = arith.constant 1 : index
    %c0_19 = arith.constant 0 : index
    %c0_20 = arith.constant 0 : index
    %15 = vector.load %arg9[%c0_18, %c1, %c0_19, %c0_20] : memref<2x10x16x128xf32, #tpu.memory_space<vmem>>, vector<2x8x1x128xf32>
    tpu.vector_store %arg9[%c0_18, %c1, %c0_19, %c0_20], %14 {strides = array<i32>} : memref<2x10x16x128xf32, #tpu.memory_space<vmem>>, vector<2x8x1x128xf32>,
    %cst_21 = arith.constant 0.000000e+00 : f32
    %16 = vector.broadcast %cst_21 : f32 to vector<2x8x7x128xf32>
    %c0_22 = arith.constant 0 : index
    %c1_23 = arith.constant 1 : index
    %c9_24 = arith.constant 9 : index
    %c0_25 = arith.constant 0 : index
    %17 = vector.load %arg9[%c0_22, %c1_23, %c9_24, %c0_25] : memref<2x10x16x128xf32, #tpu.memory_space<vmem>>, vector<2x8x7x128xf32>
    tpu.vector_store %arg9[%c0_22, %c1_23, %c9_24, %c0_25], %16 {strides = array<i32>} : memref<2x10x16x128xf32, #tpu.memory_space<vmem>>, vector<2x8x7x128xf32>,
    %18 = vector.shape_cast %9 : vector<128x128xf32> to vector<2x8x8x128xf32>
    %c0_26 = arith.constant 0 : index
    %c1_27 = arith.constant 1 : index
    %c1_28 = arith.constant 1 : index
    %c0_29 = arith.constant 0 : index
    %19 = vector.load %arg9[%c0_26, %c1_27, %c1_28, %c0_29] : memref<2x10x16x128xf32, #tpu.memory_space<vmem>>, vector<2x8x8x128xf32>
    tpu.vector_store %arg9[%c0_26, %c1_27, %c1_28, %c0_29], %18 {strides = array<i32>} : memref<2x10x16x128xf32, #tpu.memory_space<vmem>>, vector<2x8x8x128xf32>,
    %c0_30 = arith.constant 0 : index
    %c0_31 = arith.constant 0 : index
    %c0_32 = arith.constant 0 : index
    %c0_33 = arith.constant 0 : index
    %20 = vector.load %arg9[%c0_30, %c0_31, %c0_32, %c0_33] : memref<2x10x16x128xf32, #tpu.memory_space<vmem>>, vector<2x8x16x128xf32>
    %c0_34 = arith.constant 0 : index
    %c1_35 = arith.constant 1 : index
    %c0_36 = arith.constant 0 : index
    %c0_37 = arith.constant 0 : index
    %21 = vector.load %arg9[%c0_34, %c1_35, %c0_36, %c0_37] : memref<2x10x16x128xf32, #tpu.memory_space<vmem>>, vector<2x8x16x128xf32>
    %c0_38 = arith.constant 0 : index
    %c2 = arith.constant 2 : index
    %c0_39 = arith.constant 0 : index
    %c0_40 = arith.constant 0 : index
    %22 = vector.load %arg9[%c0_38, %c2, %c0_39, %c0_40] : memref<2x10x16x128xf32, #tpu.memory_space<vmem>>, vector<2x8x16x128xf32>
    %23 = tpu.concatenate %20, %21, %22 in 3 : vector<2x8x16x128xf32>, vector<2x8x16x128xf32>, vector<2x8x16x128xf32> -> vector<2x8x16x384xf32>
    %24 = vector.shape_cast %23 : vector<2x8x16x384xf32> to vector<256x384xf32>
    %25 = arith.truncf %24 : vector<256x384xf32> to vector<256x384xbf16>
    %cst_41 = arith.constant 0.000000e+00 : f32
    %26 = vector.broadcast %cst_41 : f32 to vector<256x128xf32>
    %c0_42 = arith.constant 0 : index
    %c0_43 = arith.constant 0 : index
    %c0_44 = arith.constant 0 : index
    %27 = vector.load %arg3[%c0_42, %c0_43, %c0_44] : memref<3x384x128xbf16, #tpu.memory_space<vmem>>, vector<1x384x128xbf16>
    %28 = vector.shape_cast %27 : vector<1x384x128xbf16> to vector<384x128xbf16>
    %cst_45 = arith.constant dense<0.000000e+00> : vector<256x128xf32>
    %29 = tpu.matmul %25, %28, %cst_45 {dimension_numbers = #tpu.dot_dimension_numbers<[1], [0], [0], [1], [0, 0, 1, 1], [], []>} : vector<256x384xbf16>, vector<384x128xbf16>, vector<256x128xf32> -> vector<256x128xf32>
    %c1_i32 = arith.constant 1 : i32
    %30 = tpu.dynamic_rotate %29 by %c1_i32 dim 0 : vector<256x128xf32>, i32 -> vector<256x128xf32>
    %31 = arith.addf %26, %30 : vector<256x128xf32>
    %c1_46 = arith.constant 1 : index
    %c0_47 = arith.constant 0 : index
    %c0_48 = arith.constant 0 : index
    %32 = vector.load %arg3[%c1_46, %c0_47, %c0_48] : memref<3x384x128xbf16, #tpu.memory_space<vmem>>, vector<1x384x128xbf16>
    %33 = vector.shape_cast %32 : vector<1x384x128xbf16> to vector<384x128xbf16>
    %cst_49 = arith.constant dense<0.000000e+00> : vector<256x128xf32>
    %34 = tpu.matmul %25, %33, %cst_49 {dimension_numbers = #tpu.dot_dimension_numbers<[1], [0], [0], [1], [0, 0, 1, 1], [], []>} : vector<256x384xbf16>, vector<384x128xbf16>, vector<256x128xf32> -> vector<256x128xf32>
    %35 = arith.addf %31, %34 : vector<256x128xf32>
    %c2_50 = arith.constant 2 : index
    %c0_51 = arith.constant 0 : index
    %c0_52 = arith.constant 0 : index
    %36 = vector.load %arg3[%c2_50, %c0_51, %c0_52] : memref<3x384x128xbf16, #tpu.memory_space<vmem>>, vector<1x384x128xbf16>
    %37 = vector.shape_cast %36 : vector<1x384x128xbf16> to vector<384x128xbf16>
    %cst_53 = arith.constant dense<0.000000e+00> : vector<256x128xf32>
    %38 = tpu.matmul %25, %37, %cst_53 {dimension_numbers = #tpu.dot_dimension_numbers<[1], [0], [0], [1], [0, 0, 1, 1], [], []>} : vector<256x384xbf16>, vector<384x128xbf16>, vector<256x128xf32> -> vector<256x128xf32>
    %c255_i32 = arith.constant 255 : i32
    %39 = tpu.dynamic_rotate %38 by %c255_i32 dim 0 : vector<256x128xf32>, i32 -> vector<256x128xf32>
    %40 = arith.addf %35, %39 : vector<256x128xf32>
    %41 = vector.shape_cast %40 : vector<256x128xf32> to vector<2x8x16x128xf32>
    %42 = vector.extract_strided_slice %41 {offsets = [0, 0, 1, 0], sizes = [2, 8, 8, 128], strides = [1, 1, 1, 1]} : vector<2x8x16x128xf32> to vector<2x8x8x128xf32>
    %43 = vector.shape_cast %42 : vector<2x8x8x128xf32> to vector<128x128xf32>
    %c0_54 = arith.constant 0 : index
    %c0_55 = arith.constant 0 : index
    %44 = vector.load %arg6[%c0_54, %c0_55] : memref<1x128xf32, #tpu.memory_space<vmem>>, vector<1x128xf32>
    %45 = vector.broadcast %44 : vector<1x128xf32> to vector<128x128xf32>
    %46 = arith.addf %43, %45 : vector<128x128xf32>
    %cst_56 = arith.constant 0.000000e+00 : f32
    %47 = vector.broadcast %cst_56 : f32 to vector<128x128xf32>
    %48 = arith.maximumf %46, %47 : vector<128x128xf32>
    %49 = arith.truncf %48 : vector<128x128xf32> to vector<128x128xbf16>
    %c0_57 = arith.constant 0 : index
    %c0_58 = arith.constant 0 : index
    %50 = vector.load %arg4[%c0_57, %c0_58] : memref<128x128xbf16, #tpu.memory_space<vmem>>, vector<128x128xbf16>
    %cst_59 = arith.constant dense<0.000000e+00> : vector<128x128xf32>
    %51 = tpu.matmul %49, %50, %cst_59 {dimension_numbers = #tpu.dot_dimension_numbers<[1], [0], [0], [1], [0, 0, 1, 1], [], []>} : vector<128x128xbf16>, vector<128x128xbf16>, vector<128x128xf32> -> vector<128x128xf32>
    %c0_60 = arith.constant 0 : index
    %c0_61 = arith.constant 0 : index
    %52 = vector.load %arg7[%c0_60, %c0_61] : memref<1x128xf32, #tpu.memory_space<vmem>>, vector<1x128xf32>
    %53 = vector.broadcast %52 : vector<1x128xf32> to vector<128x128xf32>
    %54 = arith.addf %51, %53 : vector<128x128xf32>
    %c0_62 = arith.constant 0 : index
    %c0_63 = arith.constant 0 : index
    %c0_64 = arith.constant 0 : index
    %c0_65 = arith.constant 0 : index
    %55 = vector.load %arg1[%c0_62, %c0_63, %c0_64, %c0_65] : memref<2x8x8x128xf32, #tpu.memory_space<vmem>>, vector<2x8x8x128xf32>
    %56 = vector.shape_cast %55 : vector<2x8x8x128xf32> to vector<128x128xf32>
    %57 = arith.addf %54, %56 : vector<128x128xf32>
    %cst_66 = arith.constant 0.000000e+00 : f32
    %58 = vector.broadcast %cst_66 : f32 to vector<128x128xf32>
    %59 = arith.maximumf %57, %58 : vector<128x128xf32>
    %60 = vector.shape_cast %59 : vector<128x128xf32> to vector<2x8x8x128xf32>
    %c0_67 = arith.constant 0 : index
    %c0_68 = arith.constant 0 : index
    %c0_69 = arith.constant 0 : index
    %c0_70 = arith.constant 0 : index
    %61 = vector.load %arg8[%c0_67, %c0_68, %c0_69, %c0_70] : memref<2x8x8x128xf32, #tpu.memory_space<vmem>>, vector<2x8x8x128xf32>
    tpu.vector_store %arg8[%c0_67, %c0_68, %c0_69, %c0_70], %60 {strides = array<i32>} : memref<2x8x8x128xf32, #tpu.memory_space<vmem>>, vector<2x8x8x128xf32>,
    return
  }
  func.func @transform_0(%arg0: i32) -> (i32, i32, i32, i32) {
    %c0_i32 = arith.constant 0 : i32
    %c0_i32_0 = arith.constant 0 : i32
    %c0_i32_1 = arith.constant 0 : i32
    %c0_i32_2 = arith.constant 0 : i32
    return %arg0, %c0_i32, %c0_i32_0, %c0_i32_1 : i32, i32, i32, i32
  }
  func.func @transform_1(%arg0: i32) -> (i32, i32) {
    %c0_i32 = arith.constant 0 : i32
    %c0_i32_0 = arith.constant 0 : i32
    %c0_i32_1 = arith.constant 0 : i32
    return %c0_i32, %c0_i32_0 : i32, i32
  }
  func.func @transform_2(%arg0: i32) -> (i32, i32, i32) {
    %c0_i32 = arith.constant 0 : i32
    %c0_i32_0 = arith.constant 0 : i32
    %c0_i32_1 = arith.constant 0 : i32
    %c0_i32_2 = arith.constant 0 : i32
    return %c0_i32, %c0_i32_0, %c0_i32_1 : i32, i32, i32
  }
  func.func @transform_3(%arg0: i32) -> (i32, i32) {
    %c0_i32 = arith.constant 0 : i32
    %c0_i32_0 = arith.constant 0 : i32
    %c0_i32_1 = arith.constant 0 : i32
    return %c0_i32, %c0_i32_0 : i32, i32
  }
  func.func @transform_4(%arg0: i32) -> (i32, i32) {
    %c0_i32 = arith.constant 0 : i32
    %c0_i32_0 = arith.constant 0 : i32
    %c0_i32_1 = arith.constant 0 : i32
    return %c0_i32, %c0_i32_0 : i32, i32
  }
  func.func @transform_5(%arg0: i32) -> (i32, i32) {
    %c0_i32 = arith.constant 0 : i32
    %c0_i32_0 = arith.constant 0 : i32
    %c0_i32_1 = arith.constant 0 : i32
    return %c0_i32, %c0_i32_0 : i32, i32
  }
  func.func @transform_6(%arg0: i32) -> (i32, i32) {
    %c0_i32 = arith.constant 0 : i32
    %c0_i32_0 = arith.constant 0 : i32
    %c0_i32_1 = arith.constant 0 : i32
    return %c0_i32, %c0_i32_0 : i32, i32
  }
  func.func @transform_7(%arg0: i32) -> (i32, i32, i32, i32) {
    %c0_i32 = arith.constant 0 : i32
    %c0_i32_0 = arith.constant 0 : i32
    %c0_i32_1 = arith.constant 0 : i32
    %c0_i32_2 = arith.constant 0 : i32
    return %arg0, %c0_i32, %c0_i32_0, %c0_i32_1 : i32, i32, i32, i32
  }
}

</mosaic_0001>

<llo_original>
// kernel: tpu_custom_call.1
$region0: #{tpu_custom_call.1}
  #allocation0 [shape = 'u32[]', space=smem, size = 0x4, offset = 0x4, fixed_abs, tag = 'smem constant byte address 0x4 - core index']
  #allocation1 [shape = 'u32[72,128]{1,0:T(1,128)}', space=vmem, size = 0x9000, scoped, tag = 'internal scratch']
  #allocation2 [shape = 'f32[2,10,16,128]{3,2,1,0:T(8,128)}', space=vmem, size = 0x28000, scoped, tag = 'scratch operand']
  %s0 = inlined_call_operand.hbm [shape: f32[2,8,8,128], index: 0, kind: input, shape index: {}]
  %s1 = inlined_call_operand.hbm [shape: bf16[128,128], index: 1, kind: input, shape index: {}]
  %s2 = inlined_call_operand.hbm [shape: bf16[3,384,128], index: 2, kind: input, shape index: {}]
  %s3 = inlined_call_operand.hbm [shape: bf16[128,128], index: 3, kind: input, shape index: {}]
  %s4 = inlined_call_operand.vmem [shape: f32[1,128], index: 4, kind: input, shape index: {}]
  %s5 = inlined_call_operand.vmem [shape: f32[1,128], index: 5, kind: input, shape index: {}]
  %s6 = inlined_call_operand.vmem [shape: f32[1,128], index: 6, kind: input, shape index: {}]
  %s7 = inlined_call_operand.hbm [shape: f32[2,8,8,128], index: 7, kind: output, shape index: {}]
  %s8 = sld [smem:[#allocation0]]
  $region54: #{tpu_custom_call.1} parent=0
    _
  %s10 = ssub.s32 1, %s8
  %s11 = scalar_select 0, %s10, %s8
  $region1: #{tpu_custom_call.1} parent=0
    #allocation3 [shape = 'u8[65536]{0}', space=vmem, size = 0x10000, scoped, tag = 'input window, operand 0, single buffered']
    #allocation4 [shape = 's32[1]{0}', space=sflag, size = 0x4, scoped, tag = 'scoped memory for tpu_custom_call.1']
    #allocation5 [shape = 's32[1]{0}', space=sflag, size = 0x4, scoped, tag = 'scoped memory for tpu_custom_call.1']
    #allocation6 [shape = 'u8[32768]{0}', space=vmem, size = 0x8000, scoped, tag = 'input window, operand 1, single buffered']
    #allocation7 [shape = 's32[1]{0}', space=sflag, size = 0x4, scoped, tag = 'scoped memory for tpu_custom_call.1']
    #allocation8 [shape = 'u8[294912]{0}', space=vmem, size = 0x48000, scoped, tag = 'input window, operand 2, single buffered']
    #allocation9 [shape = 'u8[32768]{0}', space=vmem, size = 0x8000, scoped, tag = 'input window, operand 3, single buffered']
    #allocation10 [shape = 's32[1]{0}', space=sflag, size = 0x4, scoped, tag = 'scoped memory for tpu_custom_call.1']
    #allocation11 [shape = 'u8[65536]{0}', space=vmem, size = 0x10000, scoped, tag = 'output window, operand 0, single buffered']
    %12 = vsyncpa [#allocation4], 0
    %13 = vsyncpa [#allocation7], 0
    %14 = vsyncpa [#allocation10], 0
    %15 = vsyncpa [#allocation5], 0
    // Predicated region
    $region2: #{tpu_custom_call.1} parent=1 // pred_check
      _
    $region3: #{tpu_custom_call.1} parent=1 // pred_check_branch
      %17 = sbr.rel (0) target = $region5
    $region4: #{tpu_custom_call.1} parent=1 // pred_region
      %19 = vsyncadd [#allocation4], 0
      %s20 = sshll.u32 %s0, 4
      %s21 = int_to_ptr.hbm [resolvable:$true] %s20
      %s22 = sshll.u32 [#allocation3], 4
      %s23 = int_to_ptr.vmem [resolvable:$true] %s22
      %28 = dma.hbm_to_vmem [thread:$0]  %s21, 2048, %s23, [#allocation4], 128, 128, 8
    $region5: #{tpu_custom_call.1} parent=1 // pred_fallthru
      _
    // Predicated region
    $region6: #{tpu_custom_call.1} parent=1 // pred_check
      _
    $region7: #{tpu_custom_call.1} parent=1 // pred_check_branch
      %30 = sbr.rel (0) target = $region9
    $region8: #{tpu_custom_call.1} parent=1 // pred_region
      %32 = vsyncadd [#allocation7], 0
      %s33 = sshll.u32 %s1, 4
      %s34 = int_to_ptr.hbm [resolvable:$true] %s33
      %s35 = sshll.u32 [#allocation6], 4
      %s36 = int_to_ptr.vmem [resolvable:$true] %s35
      %41 = dma.hbm_to_vmem [thread:$0]  %s34, 1024, %s36, [#allocation7], 64, 64, 4
    $region9: #{tpu_custom_call.1} parent=1 // pred_fallthru
      _
    // Predicated region
    $region10: #{tpu_custom_call.1} parent=1 // pred_check
      _
    $region11: #{tpu_custom_call.1} parent=1 // pred_check_branch
      %43 = sbr.rel (0) target = $region13
    $region12: #{tpu_custom_call.1} parent=1 // pred_region
      %45 = vsyncadd [#allocation7], 0
      %s46 = sshll.u32 %s2, 4
      %s47 = int_to_ptr.hbm [resolvable:$true] %s46
      %s48 = sshll.u32 [#allocation8], 4
      %s49 = int_to_ptr.vmem [resolvable:$true] %s48
      %54 = dma.hbm_to_vmem [thread:$0]  %s47, 9216, %s49, [#allocation7], 64, 64, 4
    $region13: #{tpu_custom_call.1} parent=1 // pred_fallthru
      _
    // Predicated region
    $region14: #{tpu_custom_call.1} parent=1 // pred_check
      _
    $region15: #{tpu_custom_call.1} parent=1 // pred_check_branch
      %56 = sbr.rel (0) target = $region17
    $region16: #{tpu_custom_call.1} parent=1 // pred_region
      %58 = vsyncadd [#allocation10], 0
      %s59 = sshll.u32 %s3, 4
      %s60 = int_to_ptr.hbm [resolvable:$true] %s59
      %s61 = sshll.u32 [#allocation9], 4
      %s62 = int_to_ptr.vmem [resolvable:$true] %s61
      %67 = dma.hbm_to_vmem [thread:$0]  %s60, 1024, %s62, [#allocation10], 64, 64, 4
    $region17: #{tpu_custom_call.1} parent=1 // pred_fallthru
      _
    // Predicated region
    $region18: #{tpu_custom_call.1} parent=1 // pred_check
      _
    $region19: #{tpu_custom_call.1} parent=1 // pred_check_branch
      %69 = sbr.rel (0) target = $region21
    $region20: #{tpu_custom_call.1} parent=1 // pred_region
      _
    $region21: #{tpu_custom_call.1} parent=1 // pred_fallthru
      _
    // Predicated region
    $region22: #{tpu_custom_call.1} parent=1 // pred_check
      _
    $region23: #{tpu_custom_call.1} parent=1 // pred_check_branch
      %71 = sbr.rel (0) target = $region25
    $region24: #{tpu_custom_call.1} parent=1 // pred_region
      _
    $region25: #{tpu_custom_call.1} parent=1 // pred_fallthru
      _
    // Predicated region
    $region26: #{tpu_custom_call.1} parent=1 // pred_check
      _
    $region27: #{tpu_custom_call.1} parent=1 // pred_check_branch
      %73 = sbr.rel (0) target = $region29
    $region28: #{tpu_custom_call.1} parent=1 // pred_region
      _
    $region29: #{tpu_custom_call.1} parent=1 // pred_fallthru
      _
    // Predicated region
    $region30: #{tpu_custom_call.1} parent=1 // pred_check
      _
    $region31: #{tpu_custom_call.1} parent=1 // pred_check_branch
      %75 = sbr.rel (0) target = $region33
    $region32: #{tpu_custom_call.1} parent=1 // pred_region
      %77 = dma.done [#allocation4], 2048
    $region33: #{tpu_custom_call.1} parent=1 // pred_fallthru
      _
    // Predicated region
    $region34: #{tpu_custom_call.1} parent=1 // pred_check
      _
    $region35: #{tpu_custom_call.1} parent=1 // pred_check_branch
      %79 = sbr.rel (0) target = $region37
    $region36: #{tpu_custom_call.1} parent=1 // pred_region
      %81 = dma.done [#allocation7], 1024
    $region37: #{tpu_custom_call.1} parent=1 // pred_fallthru
      _
    // Predicated region
    $region38: #{tpu_custom_call.1} parent=1 // pred_check
      _
    $region39: #{tpu_custom_call.1} parent=1 // pred_check_branch
      %83 = sbr.rel (0) target = $region41
    $region40: #{tpu_custom_call.1} parent=1 // pred_region
      %85 = dma.done [#allocation7], 9216
    $region41: #{tpu_custom_call.1} parent=1 // pred_fallthru
      _
    // Predicated region
    $region42: #{tpu_custom_call.1} parent=1 // pred_check
      _
    $region43: #{tpu_custom_call.1} parent=1 // pred_check_branch
      %87 = sbr.rel (0) target = $region45
    $region44: #{tpu_custom_call.1} parent=1 // pred_region
      %89 = dma.done [#allocation10], 1024
    $region45: #{tpu_custom_call.1} parent=1 // pred_fallthru
      _
    %v90 = vld [vmem:[#allocation3] sm:$0xff]
    %v91 = vld [vmem:[#allocation3 + $0x8] sm:$0xff]
    %v92 = vld [vmem:[#allocation3 + $0x10] sm:$0xff]
    %v93 = vld [vmem:[#allocation3 + $0x18] sm:$0xff]
    %v94 = vld [vmem:[#allocation3 + $0x20] sm:$0xff]
    %v95 = vld [vmem:[#allocation3 + $0x28] sm:$0xff]
    %v96 = vld [vmem:[#allocation3 + $0x30] sm:$0xff]
    %v97 = vld [vmem:[#allocation3 + $0x38] sm:$0xff]
    %v98 = vld [vmem:[#allocation3 + $0x40] sm:$0xff]
    %v99 = vld [vmem:[#allocation3 + $0x48] sm:$0xff]
    %v100 = vld [vmem:[#allocation3 + $0x50] sm:$0xff]
    %v101 = vld [vmem:[#allocation3 + $0x58] sm:$0xff]
    %v102 = vld [vmem:[#allocation3 + $0x60] sm:$0xff]
    %v103 = vld [vmem:[#allocation3 + $0x68] sm:$0xff]
    %v104 = vld [vmem:[#allocation3 + $0x70] sm:$0xff]
    %v105 = vld [vmem:[#allocation3 + $0x78] sm:$0xff]
    %v106 = vpack.c.bf16 %v91, %v90
    %v107 = vpack.c.bf16 %v93, %v92
    %v108 = vpack.c.bf16 %v95, %v94
    %v109 = vpack.c.bf16 %v97, %v96
    %v110 = vpack.c.bf16 %v99, %v98
    %v111 = vpack.c.bf16 %v101, %v100
    %v112 = vpack.c.bf16 %v103, %v102
    %v113 = vpack.c.bf16 %v105, %v104
    %v114 = vld [vmem:[#allocation6] sm:$0xf]
    %v115 = vld [vmem:[#allocation6 + $0x4] sm:$0xf]
    %v116 = vld [vmem:[#allocation6 + $0x8] sm:$0xf]
    %v117 = vld [vmem:[#allocation6 + $0xc] sm:$0xf]
    %v118 = vld [vmem:[#allocation6 + $0x10] sm:$0xf]
    %v119 = vld [vmem:[#allocation6 + $0x14] sm:$0xf]
    %v120 = vld [vmem:[#allocation6 + $0x18] sm:$0xf]
    %v121 = vld [vmem:[#allocation6 + $0x1c] sm:$0xf]
    %v122 = vld [vmem:[#allocation6 + $0x20] sm:$0xf]
    %v123 = vld [vmem:[#allocation6 + $0x24] sm:$0xf]
    %v124 = vld [vmem:[#allocation6 + $0x28] sm:$0xf]
    %v125 = vld [vmem:[#allocation6 + $0x2c] sm:$0xf]
    %v126 = vld [vmem:[#allocation6 + $0x30] sm:$0xf]
    %v127 = vld [vmem:[#allocation6 + $0x34] sm:$0xf]
    %v128 = vld [vmem:[#allocation6 + $0x38] sm:$0xf]
    %v129 = vld [vmem:[#allocation6 + $0x3c] sm:$0xf]
    %v130 = vld [vmem:[%s4] sm:$0x1]
    %v132 = vperm.slane %v130, 0
    %v150 = vunpack.c.l.b16 %v114
    %v151 = vunpack.c.l.b16 %v115
    %v152 = vunpack.c.l.b16 %v116
    %v153 = vunpack.c.l.b16 %v117
    %v154 = vunpack.c.l.b16 %v118
    %v155 = vunpack.c.l.b16 %v119
    %v156 = vunpack.c.l.b16 %v120
    %v157 = vunpack.c.l.b16 %v121
    %v158 = vunpack.c.l.b16 %v122
    %v159 = vunpack.c.l.b16 %v123
    %v160 = vunpack.c.l.b16 %v124
    %v161 = vunpack.c.l.b16 %v125
    %v162 = vunpack.c.l.b16 %v126
    %v163 = vunpack.c.l.b16 %v127
    %v164 = vunpack.c.l.b16 %v128
    %v165 = vunpack.c.l.b16 %v129
    %v166 = vpack.c.b16 %v151, %v150
    %v167 = vpack.c.b16 %v153, %v152
    %v168 = vpack.c.b16 %v155, %v154
    %v169 = vpack.c.b16 %v157, %v156
    %v170 = vpack.c.b16 %v159, %v158
    %v171 = vpack.c.b16 %v161, %v160
    %v172 = vpack.c.b16 %v163, %v162
    %v173 = vpack.c.b16 %v165, %v164
    %182 = vmatpush.bf16.msra.mxu0 %v173
    %183 = vmatpush.bf16.msra.mxu0 %v172
    %184 = vmatpush.bf16.msra.mxu0 %v171
    %185 = vmatpush.bf16.msra.mxu0 %v170
    %186 = vmatpush.bf16.msra.mxu0 %v169
    %187 = vmatpush.bf16.msra.mxu0 %v168
    %188 = vmatpush.bf16.msra.mxu0 %v167
    %189 = vmatpush.bf16.msra.mxu0 %v166
    %190 = vmatmul.bf16.gmra.mxu0 %v106
    %v191 = vpop.f32.mrf.mxu0
    %v192 = vadd.f32 %v132, %v191
    %v193 = vpop.f32.mrf.mxu0
    %v194 = vadd.f32 %v132, %v193
    %195 = vmatmul.bf16.gmra.mxu0 %v107
    %v196 = vpop.f32.mrf.mxu0
    %v197 = vadd.f32 %v132, %v196
    %v198 = vpop.f32.mrf.mxu0
    %v199 = vadd.f32 %v132, %v198
    %200 = vmatmul.bf16.gmra.mxu0 %v108
    %v201 = vpop.f32.mrf.mxu0
    %v202 = vadd.f32 %v132, %v201
    %v203 = vpop.f32.mrf.mxu0
    %v204 = vadd.f32 %v132, %v203
    %205 = vmatmul.bf16.gmra.mxu0 %v109
    %v206 = vpop.f32.mrf.mxu0
    %v207 = vadd.f32 %v132, %v206
    %v208 = vpop.f32.mrf.mxu0
    %v209 = vadd.f32 %v132, %v208
    %210 = vmatmul.bf16.gmra.mxu0 %v110
    %v211 = vpop.f32.mrf.mxu0
    %v212 = vadd.f32 %v132, %v211
    %v213 = vpop.f32.mrf.mxu0
    %v214 = vadd.f32 %v132, %v213
    %215 = vmatmul.bf16.gmra.mxu0 %v111
    %v216 = vpop.f32.mrf.mxu0
    %v217 = vadd.f32 %v132, %v216
    %v218 = vpop.f32.mrf.mxu0
    %v219 = vadd.f32 %v132, %v218
    %220 = vmatmul.bf16.gmra.mxu0 %v112
    %v221 = vpop.f32.mrf.mxu0
    %v222 = vadd.f32 %v132, %v221
    %v223 = vpop.f32.mrf.mxu0
    %v224 = vadd.f32 %v132, %v223
    %225 = vmatmul.bf16.gmra.mxu0 %v113
    %v226 = vpop.f32.mrf.mxu0
    %v227 = vadd.f32 %v132, %v226
    %v228 = vpop.f32.mrf.mxu0
    %v229 = vadd.f32 %v132, %v228
    %230 = vdwg.mxu0
    %v231 = vmax.f32 %v192, 0.0
    %v232 = vmax.f32 %v194, 0.0
    %v233 = vmax.f32 %v197, 0.0
    %v234 = vmax.f32 %v199, 0.0
    %v235 = vmax.f32 %v202, 0.0
    %v236 = vmax.f32 %v204, 0.0
    %v237 = vmax.f32 %v207, 0.0
    %v238 = vmax.f32 %v209, 0.0
    %v239 = vmax.f32 %v212, 0.0
    %v240 = vmax.f32 %v214, 0.0
    %v241 = vmax.f32 %v217, 0.0
    %v242 = vmax.f32 %v219, 0.0
    %v243 = vmax.f32 %v222, 0.0
    %v244 = vmax.f32 %v224, 0.0
    %v245 = vmax.f32 %v227, 0.0
    %v246 = vmax.f32 %v229, 0.0
    %247 = vst [vmem:[#allocation2] sm:$0xff] 0.0
    %248 = vst [vmem:[#allocation2 + $0x8] sm:$0xff] 0.0
    %249 = vst [vmem:[#allocation2 + $0xa0] sm:$0xff] 0.0
    %250 = vst [vmem:[#allocation2 + $0xa8] sm:$0xff] 0.0
    %s251 = scalar_lea.vmem [#allocation2], 144
    %252 = vst [vmem:[%s251] sm:$0xff] 0.0
    %253 = vst [vmem:[%s251 + $0x8] sm:$0xff] 0.0
    %254 = vst [vmem:[%s251 + $0xa0] sm:$0xff] 0.0
    %255 = vst [vmem:[%s251 + $0xa8] sm:$0xff] 0.0
    %s256 = scalar_lea.vmem [#allocation2], 16
    %257 = vst [vmem:[%s256] sm:$0x1] 0.0
    %258 = vst [vmem:[%s256 + $0x10] sm:$0x1] 0.0
    %259 = vst [vmem:[%s256 + $0x20] sm:$0x1] 0.0
    %260 = vst [vmem:[%s256 + $0x30] sm:$0x1] 0.0
    %261 = vst [vmem:[%s256 + $0x40] sm:$0x1] 0.0
    %262 = vst [vmem:[%s256 + $0x50] sm:$0x1] 0.0
    %263 = vst [vmem:[%s256 + $0x60] sm:$0x1] 0.0
    %264 = vst [vmem:[%s256 + $0x70] sm:$0x1] 0.0
    %265 = vst [vmem:[%s256 + $0xa0] sm:$0x1] 0.0
    %266 = vst [vmem:[%s256 + $0xb0] sm:$0x1] 0.0
    %267 = vst [vmem:[%s256 + $0xc0] sm:$0x1] 0.0
    %268 = vst [vmem:[%s256 + $0xd0] sm:$0x1] 0.0
    %269 = vst [vmem:[%s256 + $0xe0] sm:$0x1] 0.0
    %270 = vst [vmem:[%s256 + $0xf0] sm:$0x1] 0.0
    %271 = vst [vmem:[%s256 + $0x100] sm:$0x1] 0.0
    %272 = vst [vmem:[%s256 + $0x110] sm:$0x1] 0.0
    %273 = vst [vmem:[%s256 + $0x9] sm:$0x7f] 0.0
    %274 = vst [vmem:[%s256 + $0x19] sm:$0x7f] 0.0
    %275 = vst [vmem:[%s256 + $0x29] sm:$0x7f] 0.0
    %276 = vst [vmem:[%s256 + $0x39] sm:$0x7f] 0.0
    %277 = vst [vmem:[%s256 + $0x49] sm:$0x7f] 0.0
    %278 = vst [vmem:[%s256 + $0x59] sm:$0x7f] 0.0
    %279 = vst [vmem:[%s256 + $0x69] sm:$0x7f] 0.0
    %280 = vst [vmem:[%s256 + $0x79] sm:$0x7f] 0.0
    %281 = vst [vmem:[%s256 + $0xa9] sm:$0x7f] 0.0
    %282 = vst [vmem:[%s256 + $0xb9] sm:$0x7f] 0.0
    %283 = vst [vmem:[%s256 + $0xc9] sm:$0x7f] 0.0
    %284 = vst [vmem:[%s256 + $0xd9] sm:$0x7f] 0.0
    %285 = vst [vmem:[%s256 + $0xe9] sm:$0x7f] 0.0
    %286 = vst [vmem:[%s256 + $0xf9] sm:$0x7f] 0.0
    %287 = vst [vmem:[%s256 + $0x109] sm:$0x7f] 0.0
    %288 = vst [vmem:[%s256 + $0x119] sm:$0x7f] 0.0
    %289 = vst [vmem:[%s256 + $0x1] sm:$0xff] %v231
    %290 = vst [vmem:[%s256 + $0x11] sm:$0xff] %v232
    %291 = vst [vmem:[%s256 + $0x21] sm:$0xff] %v233
    %292 = vst [vmem:[%s256 + $0x31] sm:$0xff] %v234
    %293 = vst [vmem:[%s256 + $0x41] sm:$0xff] %v235
    %294 = vst [vmem:[%s256 + $0x51] sm:$0xff] %v236
    %295 = vst [vmem:[%s256 + $0x61] sm:$0xff] %v237
    %296 = vst [vmem:[%s256 + $0x71] sm:$0xff] %v238
    %297 = vst [vmem:[%s256 + $0xa1] sm:$0xff] %v239
    %298 = vst [vmem:[%s256 + $0xb1] sm:$0xff] %v240
    %299 = vst [vmem:[%s256 + $0xc1] sm:$0xff] %v241
    %300 = vst [vmem:[%s256 + $0xd1] sm:$0xff] %v242
    %301 = vst [vmem:[%s256 + $0xe1] sm:$0xff] %v243
    %302 = vst [vmem:[%s256 + $0xf1] sm:$0xff] %v244
    %303 = vst [vmem:[%s256 + $0x101] sm:$0xff] %v245
    %304 = vst [vmem:[%s256 + $0x111] sm:$0xff] %v246
    %v305 = vld [vmem:[#allocation2] sm:$0xff]
    %v306 = vld [vmem:[#allocation2 + $0x8] sm:$0xff]
    %v307 = vld [vmem:[#allocation2 + $0x10] sm:$0xff]
    %v308 = vld [vmem:[#allocation2 + $0x18] sm:$0xff]
    %v309 = vld [vmem:[#allocation2 + $0x20] sm:$0xff]
    %v310 = vld [vmem:[#allocation2 + $0x28] sm:$0xff]
    %v311 = vld [vmem:[#allocation2 + $0x30] sm:$0xff]
    %v312 = vld [vmem:[#allocation2 + $0x38] sm:$0xff]
    %v313 = vld [vmem:[#allocation2 + $0x40] sm:$0xff]
    %v314 = vld [vmem:[#allocation2 + $0x48] sm:$0xff]
    %v315 = vld [vmem:[#allocation2 + $0x50] sm:$0xff]
    %v316 = vld [vmem:[#allocation2 + $0x58] sm:$0xff]
    %v317 = vld [vmem:[#allocation2 + $0x60] sm:$0xff]
    %v318 = vld [vmem:[#allocation2 + $0x68] sm:$0xff]
    %v319 = vld [vmem:[#allocation2 + $0x70] sm:$0xff]
    %v320 = vld [vmem:[#allocation2 + $0x78] sm:$0xff]
    %v321 = vld [vmem:[#allocation2 + $0xa0] sm:$0xff]
    %v322 = vld [vmem:[#allocation2 + $0xa8] sm:$0xff]
    %v323 = vld [vmem:[#allocation2 + $0xb0] sm:$0xff]
    %v324 = vld [vmem:[#allocation2 + $0xb8] sm:$0xff]
    %v325 = vld [vmem:[#allocation2 + $0xc0] sm:$0xff]
    %v326 = vld [vmem:[#allocation2 + $0xc8] sm:$0xff]
    %v327 = vld [vmem:[#allocation2 + $0xd0] sm:$0xff]
    %v328 = vld [vmem:[#allocation2 + $0xd8] sm:$0xff]
    %v329 = vld [vmem:[#allocation2 + $0xe0] sm:$0xff]
    %v330 = vld [vmem:[#allocation2 + $0xe8] sm:$0xff]
    %v331 = vld [vmem:[#allocation2 + $0xf0] sm:$0xff]
    %v332 = vld [vmem:[#allocation2 + $0xf8] sm:$0xff]
    %v333 = vld [vmem:[#allocation2 + $0x100] sm:$0xff]
    %v334 = vld [vmem:[#allocation2 + $0x108] sm:$0xff]
    %v335 = vld [vmem:[#allocation2 + $0x110] sm:$0xff]
    %v336 = vld [vmem:[#allocation2 + $0x118] sm:$0xff]
    %v337 = vld [vmem:[%s256] sm:$0xff]
    %v338 = vld [vmem:[%s256 + $0x8] sm:$0xff]
    %v339 = vld [vmem:[%s256 + $0x10] sm:$0xff]
    %v340 = vld [vmem:[%s256 + $0x18] sm:$0xff]
    %v341 = vld [vmem:[%s256 + $0x20] sm:$0xff]
    %v342 = vld [vmem:[%s256 + $0x28] sm:$0xff]
    %v343 = vld [vmem:[%s256 + $0x30] sm:$0xff]
    %v344 = vld [vmem:[%s256 + $0x38] sm:$0xff]
    %v345 = vld [vmem:[%s256 + $0x40] sm:$0xff]
    %v346 = vld [vmem:[%s256 + $0x48] sm:$0xff]
    %v347 = vld [vmem:[%s256 + $0x50] sm:$0xff]
    %v348 = vld [vmem:[%s256 + $0x58] sm:$0xff]
    %v349 = vld [vmem:[%s256 + $0x60] sm:$0xff]
    %v350 = vld [vmem:[%s256 + $0x68] sm:$0xff]
    %v351 = vld [vmem:[%s256 + $0x70] sm:$0xff]
    %v352 = vld [vmem:[%s256 + $0x78] sm:$0xff]
    %v353 = vld [vmem:[%s256 + $0xa0] sm:$0xff]
    %v354 = vld [vmem:[%s256 + $0xa8] sm:$0xff]
    %v355 = vld [vmem:[%s256 + $0xb0] sm:$0xff]
    %v356 = vld [vmem:[%s256 + $0xb8] sm:$0xff]
    %v357 = vld [vmem:[%s256 + $0xc0] sm:$0xff]
    %v358 = vld [vmem:[%s256 + $0xc8] sm:$0xff]
    %v359 = vld [vmem:[%s256 + $0xd0] sm:$0xff]
    %v360 = vld [vmem:[%s256 + $0xd8] sm:$0xff]
    %v361 = vld [vmem:[%s256 + $0xe0] sm:$0xff]
    %v362 = vld [vmem:[%s256 + $0xe8] sm:$0xff]
    %v363 = vld [vmem:[%s256 + $0xf0] sm:$0xff]
    %v364 = vld [vmem:[%s256 + $0xf8] sm:$0xff]
    %v365 = vld [vmem:[%s256 + $0x100] sm:$0xff]
    %v366 = vld [vmem:[%s256 + $0x108] sm:$0xff]
    %v367 = vld [vmem:[%s256 + $0x110] sm:$0xff]
    %v368 = vld [vmem:[%s256 + $0x118] sm:$0xff]
    %s369 = scalar_lea.vmem [#allocation2], 32
    %v370 = vld [vmem:[%s369] sm:$0xff]
    %v371 = vld [vmem:[%s369 + $0x8] sm:$0xff]
    %v372 = vld [vmem:[%s369 + $0x10] sm:$0xff]
    %v373 = vld [vmem:[%s369 + $0x18] sm:$0xff]
    %v374 = vld [vmem:[%s369 + $0x20] sm:$0xff]
    %v375 = vld [vmem:[%s369 + $0x28] sm:$0xff]
    %v376 = vld [vmem:[%s369 + $0x30] sm:$0xff]
    %v377 = vld [vmem:[%s369 + $0x38] sm:$0xff]
    %v378 = vld [vmem:[%s369 + $0x40] sm:$0xff]
    %v379 = vld [vmem:[%s369 + $0x48] sm:$0xff]
    %v380 = vld [vmem:[%s369 + $0x50] sm:$0xff]
    %v381 = vld [vmem:[%s369 + $0x58] sm:$0xff]
    %v382 = vld [vmem:[%s369 + $0x60] sm:$0xff]
    %v383 = vld [vmem:[%s369 + $0x68] sm:$0xff]
    %v384 = vld [vmem:[%s369 + $0x70] sm:$0xff]
    %v385 = vld [vmem:[%s369 + $0x78] sm:$0xff]
    %v386 = vld [vmem:[%s369 + $0xa0] sm:$0xff]
    %v387 = vld [vmem:[%s369 + $0xa8] sm:$0xff]
    %v388 = vld [vmem:[%s369 + $0xb0] sm:$0xff]
    %v389 = vld [vmem:[%s369 + $0xb8] sm:$0xff]
    %v390 = vld [vmem:[%s369 + $0xc0] sm:$0xff]
    %v391 = vld [vmem:[%s369 + $0xc8] sm:$0xff]
    %v392 = vld [vmem:[%s369 + $0xd0] sm:$0xff]
    %v393 = vld [vmem:[%s369 + $0xd8] sm:$0xff]
    %v394 = vld [vmem:[%s369 + $0xe0] sm:$0xff]
    %v395 = vld [vmem:[%s369 + $0xe8] sm:$0xff]
    %v396 = vld [vmem:[%s369 + $0xf0] sm:$0xff]
    %v397 = vld [vmem:[%s369 + $0xf8] sm:$0xff]
    %v398 = vld [vmem:[%s369 + $0x100] sm:$0xff]
    %v399 = vld [vmem:[%s369 + $0x108] sm:$0xff]
    %v400 = vld [vmem:[%s369 + $0x110] sm:$0xff]
    %v401 = vld [vmem:[%s369 + $0x118] sm:$0xff]
    %v402 = vpack.c.bf16 %v306, %v305
    %v403 = vpack.c.bf16 %v338, %v337
    %v404 = vpack.c.bf16 %v371, %v370
    %v405 = vpack.c.bf16 %v308, %v307
    %v406 = vpack.c.bf16 %v340, %v339
    %v407 = vpack.c.bf16 %v373, %v372
    %v408 = vpack.c.bf16 %v310, %v309
    %v409 = vpack.c.bf16 %v342, %v341
    %v410 = vpack.c.bf16 %v375, %v374
    %v411 = vpack.c.bf16 %v312, %v311
    %v412 = vpack.c.bf16 %v344, %v343
    %v413 = vpack.c.bf16 %v377, %v376
    %v414 = vpack.c.bf16 %v314, %v313
    %v415 = vpack.c.bf16 %v346, %v345
    %v416 = vpack.c.bf16 %v379, %v378
    %v417 = vpack.c.bf16 %v316, %v315
    %v418 = vpack.c.bf16 %v348, %v347
    %v419 = vpack.c.bf16 %v381, %v380
    %v420 = vpack.c.bf16 %v318, %v317
    %v421 = vpack.c.bf16 %v350, %v349
    %v422 = vpack.c.bf16 %v383, %v382
    %v423 = vpack.c.bf16 %v320, %v319
    %v424 = vpack.c.bf16 %v352, %v351
    %v425 = vpack.c.bf16 %v385, %v384
    %v426 = vpack.c.bf16 %v322, %v321
    %v427 = vpack.c.bf16 %v354, %v353
    %v428 = vpack.c.bf16 %v387, %v386
    %v429 = vpack.c.bf16 %v324, %v323
    %v430 = vpack.c.bf16 %v356, %v355
    %v431 = vpack.c.bf16 %v389, %v388
    %v432 = vpack.c.bf16 %v326, %v325
    %v433 = vpack.c.bf16 %v358, %v357
    %v434 = vpack.c.bf16 %v391, %v390
    %v435 = vpack.c.bf16 %v328, %v327
    %v436 = vpack.c.bf16 %v360, %v359
    %v437 = vpack.c.bf16 %v393, %v392
    %v438 = vpack.c.bf16 %v330, %v329
    %v439 = vpack.c.bf16 %v362, %v361
    %v440 = vpack.c.bf16 %v395, %v394
    %v441 = vpack.c.bf16 %v332, %v331
    %v442 = vpack.c.bf16 %v364, %v363
    %v443 = vpack.c.bf16 %v397, %v396
    %v444 = vpack.c.bf16 %v334, %v333
    %v445 = vpack.c.bf16 %v366, %v365
    %v446 = vpack.c.bf16 %v399, %v398
    %v447 = vpack.c.bf16 %v336, %v335
    %v448 = vpack.c.bf16 %v368, %v367
    %v449 = vpack.c.bf16 %v401, %v400
    %v450 = vld [vmem:[#allocation8] sm:$0xf]
    %v451 = vld [vmem:[#allocation8 + $0x4] sm:$0xf]
    %v452 = vld [vmem:[#allocation8 + $0x8] sm:$0xf]
    %v453 = vld [vmem:[#allocation8 + $0xc] sm:$0xf]
    %v454 = vld [vmem:[#allocation8 + $0x10] sm:$0xf]
    %v455 = vld [vmem:[#allocation8 + $0x14] sm:$0xf]
    %v456 = vld [vmem:[#allocation8 + $0x18] sm:$0xf]
    %v457 = vld [vmem:[#allocation8 + $0x1c] sm:$0xf]
    %v458 = vld [vmem:[#allocation8 + $0x20] sm:$0xf]
    %v459 = vld [vmem:[#allocation8 + $0x24] sm:$0xf]
    %v460 = vld [vmem:[#allocation8 + $0x28] sm:$0xf]
    %v461 = vld [vmem:[#allocation8 + $0x2c] sm:$0xf]
    %v462 = vld [vmem:[#allocation8 + $0x30] sm:$0xf]
    %v463 = vld [vmem:[#allocation8 + $0x34] sm:$0xf]
    %v464 = vld [vmem:[#allocation8 + $0x38] sm:$0xf]
    %v465 = vld [vmem:[#allocation8 + $0x3c] sm:$0xf]
    %v466 = vld [vmem:[#allocation8 + $0x40] sm:$0xf]
    %v467 = vld [vmem:[#allocation8 + $0x44] sm:$0xf]
    %v468 = vld [vmem:[#allocation8 + $0x48] sm:$0xf]
    %v469 = vld [vmem:[#allocation8 + $0x4c] sm:$0xf]
    %v470 = vld [vmem:[#allocation8 + $0x50] sm:$0xf]
    %v471 = vld [vmem:[#allocation8 + $0x54] sm:$0xf]
    %v472 = vld [vmem:[#allocation8 + $0x58] sm:$0xf]
    %v473 = vld [vmem:[#allocation8 + $0x5c] sm:$0xf]
    %v474 = vld [vmem:[#allocation8 + $0x60] sm:$0xf]
    %v475 = vld [vmem:[#allocation8 + $0x64] sm:$0xf]
    %v476 = vld [vmem:[#allocation8 + $0x68] sm:$0xf]
    %v477 = vld [vmem:[#allocation8 + $0x6c] sm:$0xf]
    %v478 = vld [vmem:[#allocation8 + $0x70] sm:$0xf]
    %v479 = vld [vmem:[#allocation8 + $0x74] sm:$0xf]
    %v480 = vld [vmem:[#allocation8 + $0x78] sm:$0xf]
    %v481 = vld [vmem:[#allocation8 + $0x7c] sm:$0xf]
    %v482 = vld [vmem:[#allocation8 + $0x80] sm:$0xf]
    %v483 = vld [vmem:[#allocation8 + $0x84] sm:$0xf]
    %v484 = vld [vmem:[#allocation8 + $0x88] sm:$0xf]
    %v485 = vld [vmem:[#allocation8 + $0x8c] sm:$0xf]
    %v486 = vld [vmem:[#allocation8 + $0x90] sm:$0xf]
    %v487 = vld [vmem:[#allocation8 + $0x94] sm:$0xf]
    %v488 = vld [vmem:[#allocation8 + $0x98] sm:$0xf]
    %v489 = vld [vmem:[#allocation8 + $0x9c] sm:$0xf]
    %v490 = vld [vmem:[#allocation8 + $0xa0] sm:$0xf]
    %v491 = vld [vmem:[#allocation8 + $0xa4] sm:$0xf]
    %v492 = vld [vmem:[#allocation8 + $0xa8] sm:$0xf]
    %v493 = vld [vmem:[#allocation8 + $0xac] sm:$0xf]
    %v494 = vld [vmem:[#allocation8 + $0xb0] sm:$0xf]
    %v495 = vld [vmem:[#allocation8 + $0xb4] sm:$0xf]
    %v496 = vld [vmem:[#allocation8 + $0xb8] sm:$0xf]
    %v497 = vld [vmem:[#allocation8 + $0xbc] sm:$0xf]
    %v546 = vunpack.c.l.b16 %v450
    %v547 = vunpack.c.l.b16 %v451
    %v548 = vunpack.c.l.b16 %v452
    %v549 = vunpack.c.l.b16 %v453
    %v550 = vunpack.c.l.b16 %v454
    %v551 = vunpack.c.l.b16 %v455
    %v552 = vunpack.c.l.b16 %v456
    %v553 = vunpack.c.l.b16 %v457
    %v554 = vunpack.c.l.b16 %v458
    %v555 = vunpack.c.l.b16 %v459
    %v556 = vunpack.c.l.b16 %v460
    %v557 = vunpack.c.l.b16 %v461
    %v558 = vunpack.c.l.b16 %v462
    %v559 = vunpack.c.l.b16 %v463
    %v560 = vunpack.c.l.b16 %v464
    %v561 = vunpack.c.l.b16 %v465
    %v562 = vunpack.c.l.b16 %v466
    %v563 = vunpack.c.l.b16 %v467
    %v564 = vunpack.c.l.b16 %v468
    %v565 = vunpack.c.l.b16 %v469
    %v566 = vunpack.c.l.b16 %v470
    %v567 = vunpack.c.l.b16 %v471
    %v568 = vunpack.c.l.b16 %v472
    %v569 = vunpack.c.l.b16 %v473
    %v570 = vunpack.c.l.b16 %v474
    %v571 = vunpack.c.l.b16 %v475
    %v572 = vunpack.c.l.b16 %v476
    %v573 = vunpack.c.l.b16 %v477
    %v574 = vunpack.c.l.b16 %v478
    %v575 = vunpack.c.l.b16 %v479
    %v576 = vunpack.c.l.b16 %v480
    %v577 = vunpack.c.l.b16 %v481
    %v578 = vunpack.c.l.b16 %v482
    %v579 = vunpack.c.l.b16 %v483
    %v580 = vunpack.c.l.b16 %v484
    %v581 = vunpack.c.l.b16 %v485
    %v582 = vunpack.c.l.b16 %v486
    %v583 = vunpack.c.l.b16 %v487
    %v584 = vunpack.c.l.b16 %v488
    %v585 = vunpack.c.l.b16 %v489
    %v586 = vunpack.c.l.b16 %v490
    %v587 = vunpack.c.l.b16 %v491
    %v588 = vunpack.c.l.b16 %v492
    %v589 = vunpack.c.l.b16 %v493
    %v590 = vunpack.c.l.b16 %v494
    %v591 = vunpack.c.l.b16 %v495
    %v592 = vunpack.c.l.b16 %v496
    %v593 = vunpack.c.l.b16 %v497
    %v594 = vpack.c.b16 %v547, %v546
    %v595 = vpack.c.b16 %v549, %v548
    %v596 = vpack.c.b16 %v551, %v550
    %v597 = vpack.c.b16 %v553, %v552
    %v598 = vpack.c.b16 %v555, %v554
    %v599 = vpack.c.b16 %v557, %v556
    %v600 = vpack.c.b16 %v559, %v558
    %v601 = vpack.c.b16 %v561, %v560
    %v602 = vpack.c.b16 %v563, %v562
    %v603 = vpack.c.b16 %v565, %v564
    %v604 = vpack.c.b16 %v567, %v566
    %v605 = vpack.c.b16 %v569, %v568
    %v606 = vpack.c.b16 %v571, %v570
    %v607 = vpack.c.b16 %v573, %v572
    %v608 = vpack.c.b16 %v575, %v574
    %v609 = vpack.c.b16 %v577, %v576
    %v610 = vpack.c.b16 %v579, %v578
    %v611 = vpack.c.b16 %v581, %v580
    %v612 = vpack.c.b16 %v583, %v582
    %v613 = vpack.c.b16 %v585, %v584
    %v614 = vpack.c.b16 %v587, %v586
    %v615 = vpack.c.b16 %v589, %v588
    %v616 = vpack.c.b16 %v591, %v590
    %v617 = vpack.c.b16 %v593, %v592
    %642 = vmatpush.bf16.msra.mxu0 %v601
    %643 = vmatpush.bf16.msra.mxu0 %v600
    %644 = vmatpush.bf16.msra.mxu0 %v599
    %645 = vmatpush.bf16.msra.mxu0 %v598
    %646 = vmatpush.bf16.msra.mxu0 %v597
    %647 = vmatpush.bf16.msra.mxu0 %v596
    %648 = vmatpush.bf16.msra.mxu0 %v595
    %649 = vmatpush.bf16.msra.mxu0 %v594
    %650 = vmatmul.bf16.gmra.mxu0 %v402
    %v651 = vpop.f32.mrf.mxu0
    %v652 = vadd.f32 0.0, %v651
    %v653 = vpop.f32.mrf.mxu0
    %v654 = vadd.f32 0.0, %v653
    %655 = vmatmul.bf16.gmra.mxu0 %v405
    %v656 = vpop.f32.mrf.mxu0
    %v657 = vadd.f32 0.0, %v656
    %v658 = vpop.f32.mrf.mxu0
    %v659 = vadd.f32 0.0, %v658
    %660 = vmatmul.bf16.gmra.mxu0 %v408
    %v661 = vpop.f32.mrf.mxu0
    %v662 = vadd.f32 0.0, %v661
    %v663 = vpop.f32.mrf.mxu0
    %v664 = vadd.f32 0.0, %v663
    %665 = vmatmul.bf16.gmra.mxu0 %v411
    %v666 = vpop.f32.mrf.mxu0
    %v667 = vadd.f32 0.0, %v666
    %v668 = vpop.f32.mrf.mxu0
    %v669 = vadd.f32 0.0, %v668
    %670 = vmatmul.bf16.gmra.mxu0 %v414
    %v671 = vpop.f32.mrf.mxu0
    %v672 = vadd.f32 0.0, %v671
    %v673 = vpop.f32.mrf.mxu0
    %v674 = vadd.f32 0.0, %v673
    %675 = vmatmul.bf16.gmra.mxu0 %v417
    %v676 = vpop.f32.mrf.mxu0
    %v677 = vadd.f32 0.0, %v676
    %v678 = vpop.f32.mrf.mxu0
    %v679 = vadd.f32 0.0, %v678
    %680 = vmatmul.bf16.gmra.mxu0 %v420
    %v681 = vpop.f32.mrf.mxu0
    %v682 = vadd.f32 0.0, %v681
    %v683 = vpop.f32.mrf.mxu0
    %v684 = vadd.f32 0.0, %v683
    %685 = vmatmul.bf16.gmra.mxu0 %v423
    %v686 = vpop.f32.mrf.mxu0
    %v687 = vadd.f32 0.0, %v686
    %v688 = vpop.f32.mrf.mxu0
    %v689 = vadd.f32 0.0, %v688
    %690 = vmatmul.bf16.gmra.mxu0 %v426
    %v691 = vpop.f32.mrf.mxu0
    %v692 = vadd.f32 0.0, %v691
    %v693 = vpop.f32.mrf.mxu0
    %v694 = vadd.f32 0.0, %v693
    %695 = vmatmul.bf16.gmra.mxu0 %v429
    %v696 = vpop.f32.mrf.mxu0
    %v697 = vadd.f32 0.0, %v696
    %v698 = vpop.f32.mrf.mxu0
    %v699 = vadd.f32 0.0, %v698
    %700 = vmatmul.bf16.gmra.mxu0 %v432
    %v701 = vpop.f32.mrf.mxu0
    %v702 = vadd.f32 0.0, %v701
    %v703 = vpop.f32.mrf.mxu0
    %v704 = vadd.f32 0.0, %v703
    %705 = vmatmul.bf16.gmra.mxu0 %v435
    %v706 = vpop.f32.mrf.mxu0
    %v707 = vadd.f32 0.0, %v706
    %v708 = vpop.f32.mrf.mxu0
    %v709 = vadd.f32 0.0, %v708
    %710 = vmatmul.bf16.gmra.mxu0 %v438
    %v711 = vpop.f32.mrf.mxu0
    %v712 = vadd.f32 0.0, %v711
    %v713 = vpop.f32.mrf.mxu0
    %v714 = vadd.f32 0.0, %v713
    %715 = vmatmul.bf16.gmra.mxu0 %v441
    %v716 = vpop.f32.mrf.mxu0
    %v717 = vadd.f32 0.0, %v716
    %v718 = vpop.f32.mrf.mxu0
    %v719 = vadd.f32 0.0, %v718
    %720 = vmatmul.bf16.gmra.mxu0 %v444
    %v721 = vpop.f32.mrf.mxu0
    %v722 = vadd.f32 0.0, %v721
    %v723 = vpop.f32.mrf.mxu0
    %v724 = vadd.f32 0.0, %v723
    %725 = vmatmul.bf16.gmra.mxu0 %v447
    %v726 = vpop.f32.mrf.mxu0
    %v727 = vadd.f32 0.0, %v726
    %v728 = vpop.f32.mrf.mxu0
    %v729 = vadd.f32 0.0, %v728
    %730 = vdwg.mxu0
    %731 = vmatpush.bf16.msra.mxu0 %v609
    %732 = vmatpush.bf16.msra.mxu0 %v608
    %733 = vmatpush.bf16.msra.mxu0 %v607
    %734 = vmatpush.bf16.msra.mxu0 %v606
    %735 = vmatpush.bf16.msra.mxu0 %v605
    %736 = vmatpush.bf16.msra.mxu0 %v604
    %737 = vmatpush.bf16.msra.mxu0 %v603
    %738 = vmatpush.bf16.msra.mxu0 %v602
    %739 = vmatmul.bf16.gmra.mxu0 %v403
    %v740 = vpop.f32.mrf.mxu0
    %v741 = vadd.f32 %v652, %v740
    %v742 = vpop.f32.mrf.mxu0
    %v743 = vadd.f32 %v654, %v742
    %744 = vmatmul.bf16.gmra.mxu0 %v406
    %v745 = vpop.f32.mrf.mxu0
    %v746 = vadd.f32 %v657, %v745
    %v747 = vpop.f32.mrf.mxu0
    %v748 = vadd.f32 %v659, %v747
    %749 = vmatmul.bf16.gmra.mxu0 %v409
    %v750 = vpop.f32.mrf.mxu0
    %v751 = vadd.f32 %v662, %v750
    %v752 = vpop.f32.mrf.mxu0
    %v753 = vadd.f32 %v664, %v752
    %754 = vmatmul.bf16.gmra.mxu0 %v412
    %v755 = vpop.f32.mrf.mxu0
    %v756 = vadd.f32 %v667, %v755
    %v757 = vpop.f32.mrf.mxu0
    %v758 = vadd.f32 %v669, %v757
    %759 = vmatmul.bf16.gmra.mxu0 %v415
    %v760 = vpop.f32.mrf.mxu0
    %v761 = vadd.f32 %v672, %v760
    %v762 = vpop.f32.mrf.mxu0
    %v763 = vadd.f32 %v674, %v762
    %764 = vmatmul.bf16.gmra.mxu0 %v418
    %v765 = vpop.f32.mrf.mxu0
    %v766 = vadd.f32 %v677, %v765
    %v767 = vpop.f32.mrf.mxu0
    %v768 = vadd.f32 %v679, %v767
    %769 = vmatmul.bf16.gmra.mxu0 %v421
    %v770 = vpop.f32.mrf.mxu0
    %v771 = vadd.f32 %v682, %v770
    %v772 = vpop.f32.mrf.mxu0
    %v773 = vadd.f32 %v684, %v772
    %774 = vmatmul.bf16.gmra.mxu0 %v424
    %v775 = vpop.f32.mrf.mxu0
    %v776 = vadd.f32 %v687, %v775
    %v777 = vpop.f32.mrf.mxu0
    %v778 = vadd.f32 %v689, %v777
    %779 = vmatmul.bf16.gmra.mxu0 %v427
    %v780 = vpop.f32.mrf.mxu0
    %v781 = vadd.f32 %v692, %v780
    %v782 = vpop.f32.mrf.mxu0
    %v783 = vadd.f32 %v694, %v782
    %784 = vmatmul.bf16.gmra.mxu0 %v430
    %v785 = vpop.f32.mrf.mxu0
    %v786 = vadd.f32 %v697, %v785
    %v787 = vpop.f32.mrf.mxu0
    %v788 = vadd.f32 %v699, %v787
    %789 = vmatmul.bf16.gmra.mxu0 %v433
    %v790 = vpop.f32.mrf.mxu0
    %v791 = vadd.f32 %v702, %v790
    %v792 = vpop.f32.mrf.mxu0
    %v793 = vadd.f32 %v704, %v792
    %794 = vmatmul.bf16.gmra.mxu0 %v436
    %v795 = vpop.f32.mrf.mxu0
    %v796 = vadd.f32 %v707, %v795
    %v797 = vpop.f32.mrf.mxu0
    %v798 = vadd.f32 %v709, %v797
    %799 = vmatmul.bf16.gmra.mxu0 %v439
    %v800 = vpop.f32.mrf.mxu0
    %v801 = vadd.f32 %v712, %v800
    %v802 = vpop.f32.mrf.mxu0
    %v803 = vadd.f32 %v714, %v802
    %804 = vmatmul.bf16.gmra.mxu0 %v442
    %v805 = vpop.f32.mrf.mxu0
    %v806 = vadd.f32 %v717, %v805
    %v807 = vpop.f32.mrf.mxu0
    %v808 = vadd.f32 %v719, %v807
    %809 = vmatmul.bf16.gmra.mxu0 %v445
    %v810 = vpop.f32.mrf.mxu0
    %v811 = vadd.f32 %v722, %v810
    %v812 = vpop.f32.mrf.mxu0
    %v813 = vadd.f32 %v724, %v812
    %814 = vmatmul.bf16.gmra.mxu0 %v448
    %v815 = vpop.f32.mrf.mxu0
    %v816 = vadd.f32 %v727, %v815
    %v817 = vpop.f32.mrf.mxu0
    %v818 = vadd.f32 %v729, %v817
    %819 = vdwg.mxu0
    %820 = vmatpush.bf16.msra.mxu0 %v617
    %821 = vmatpush.bf16.msra.mxu0 %v616
    %822 = vmatpush.bf16.msra.mxu0 %v615
    %823 = vmatpush.bf16.msra.mxu0 %v614
    %824 = vmatpush.bf16.msra.mxu0 %v613
    %825 = vmatpush.bf16.msra.mxu0 %v612
    %826 = vmatpush.bf16.msra.mxu0 %v611
    %827 = vmatpush.bf16.msra.mxu0 %v610
    %828 = vmatmul.bf16.gmra.mxu0 %v404
    %v829 = vpop.f32.mrf.mxu0
    %v830 = vadd.f32 %v741, %v829
    %v831 = vpop.f32.mrf.mxu0
    %v832 = vadd.f32 %v743, %v831
    %833 = vmatmul.bf16.gmra.mxu0 %v407
    %v834 = vpop.f32.mrf.mxu0
    %v835 = vadd.f32 %v746, %v834
    %v836 = vpop.f32.mrf.mxu0
    %v837 = vadd.f32 %v748, %v836
    %838 = vmatmul.bf16.gmra.mxu0 %v410
    %v839 = vpop.f32.mrf.mxu0
    %v840 = vadd.f32 %v751, %v839
    %v841 = vpop.f32.mrf.mxu0
    %v842 = vadd.f32 %v753, %v841
    %843 = vmatmul.bf16.gmra.mxu0 %v413
    %v844 = vpop.f32.mrf.mxu0
    %v845 = vadd.f32 %v756, %v844
    %v846 = vpop.f32.mrf.mxu0
    %v847 = vadd.f32 %v758, %v846
    %848 = vmatmul.bf16.gmra.mxu0 %v416
    %v849 = vpop.f32.mrf.mxu0
    %v850 = vadd.f32 %v761, %v849
    %v851 = vpop.f32.mrf.mxu0
    %v852 = vadd.f32 %v763, %v851
    %853 = vmatmul.bf16.gmra.mxu0 %v419
    %v854 = vpop.f32.mrf.mxu0
    %v855 = vadd.f32 %v766, %v854
    %v856 = vpop.f32.mrf.mxu0
    %v857 = vadd.f32 %v768, %v856
    %858 = vmatmul.bf16.gmra.mxu0 %v422
    %v859 = vpop.f32.mrf.mxu0
    %v860 = vadd.f32 %v771, %v859
    %v861 = vpop.f32.mrf.mxu0
    %v862 = vadd.f32 %v773, %v861
    %863 = vmatmul.bf16.gmra.mxu0 %v425
    %v864 = vpop.f32.mrf.mxu0
    %v865 = vadd.f32 %v776, %v864
    %v866 = vpop.f32.mrf.mxu0
    %v867 = vadd.f32 %v778, %v866
    %868 = vmatmul.bf16.gmra.mxu0 %v428
    %v869 = vpop.f32.mrf.mxu0
    %v870 = vadd.f32 %v781, %v869
    %v871 = vpop.f32.mrf.mxu0
    %v872 = vadd.f32 %v783, %v871
    %873 = vmatmul.bf16.gmra.mxu0 %v431
    %v874 = vpop.f32.mrf.mxu0
    %v875 = vadd.f32 %v786, %v874
    %v876 = vpop.f32.mrf.mxu0
    %v877 = vadd.f32 %v788, %v876
    %878 = vmatmul.bf16.gmra.mxu0 %v434
    %v879 = vpop.f32.mrf.mxu0
    %v880 = vadd.f32 %v791, %v879
    %v881 = vpop.f32.mrf.mxu0
    %v882 = vadd.f32 %v793, %v881
    %883 = vmatmul.bf16.gmra.mxu0 %v437
    %v884 = vpop.f32.mrf.mxu0
    %v885 = vadd.f32 %v796, %v884
    %v886 = vpop.f32.mrf.mxu0
    %v887 = vadd.f32 %v798, %v886
    %888 = vmatmul.bf16.gmra.mxu0 %v440
    %v889 = vpop.f32.mrf.mxu0
    %v890 = vadd.f32 %v801, %v889
    %v891 = vpop.f32.mrf.mxu0
    %v892 = vadd.f32 %v803, %v891
    %893 = vmatmul.bf16.gmra.mxu0 %v443
    %v894 = vpop.f32.mrf.mxu0
    %v895 = vadd.f32 %v806, %v894
    %v896 = vpop.f32.mrf.mxu0
    %v897 = vadd.f32 %v808, %v896
    %898 = vmatmul.bf16.gmra.mxu0 %v446
    %v899 = vpop.f32.mrf.mxu0
    %v900 = vadd.f32 %v811, %v899
    %v901 = vpop.f32.mrf.mxu0
    %v902 = vadd.f32 %v813, %v901
    %903 = vmatmul.bf16.gmra.mxu0 %v449
    %v904 = vpop.f32.mrf.mxu0
    %v905 = vadd.f32 %v816, %v904
    %v906 = vpop.f32.mrf.mxu0
    %v907 = vadd.f32 %v818, %v906
    %908 = vdwg.mxu0
    %v909 = vrot.slane %v830, 7
    %v910 = vrot.slane %v832, 7
    %v911 = vrot.slane %v835, 7
    %v912 = vrot.slane %v837, 7
    %v913 = vrot.slane %v840, 7
    %v914 = vrot.slane %v842, 7
    %v915 = vrot.slane %v845, 7
    %v916 = vrot.slane %v847, 7
    %v917 = vrot.slane %v850, 7
    %v918 = vrot.slane %v852, 7
    %v919 = vrot.slane %v855, 7
    %v920 = vrot.slane %v857, 7
    %v921 = vrot.slane %v860, 7
    %v922 = vrot.slane %v862, 7
    %v923 = vrot.slane %v865, 7
    %v924 = vrot.slane %v867, 7
    %v925 = vrot.slane %v870, 7
    %v926 = vrot.slane %v872, 7
    %v927 = vrot.slane %v875, 7
    %v928 = vrot.slane %v877, 7
    %v929 = vrot.slane %v880, 7
    %v930 = vrot.slane %v882, 7
    %v931 = vrot.slane %v885, 7
    %v932 = vrot.slane %v887, 7
    %v933 = vrot.slane %v890, 7
    %v934 = vrot.slane %v892, 7
    %v935 = vrot.slane %v895, 7
    %v936 = vrot.slane %v897, 7
    %v937 = vrot.slane %v900, 7
    %v938 = vrot.slane %v902, 7
    %v939 = vrot.slane %v905, 7
    %v940 = vrot.slane %v907, 7
    %v941 = vlaneseq
    %v942 = vshrl.u32 %v941, 7
    %vm943 = vcmp.lt.s32.totalorder %v942, 1
    %v944 = vsel %vm943, %v939, %v940
    %v945 = vsel %vm943, %v938, %v939
    %v946 = vsel %vm943, %v937, %v938
    %v947 = vsel %vm943, %v936, %v937
    %v948 = vsel %vm943, %v935, %v936
    %v949 = vsel %vm943, %v934, %v935
    %v950 = vsel %vm943, %v933, %v934
    %v951 = vsel %vm943, %v932, %v933
    %v952 = vsel %vm943, %v931, %v932
    %v953 = vsel %vm943, %v930, %v931
    %v954 = vsel %vm943, %v929, %v930
    %v955 = vsel %vm943, %v928, %v929
    %v956 = vsel %vm943, %v927, %v928
    %v957 = vsel %vm943, %v926, %v927
    %v958 = vsel %vm943, %v925, %v926
    %v959 = vsel %vm943, %v924, %v925
    %v960 = vsel %vm943, %v923, %v924
    %v961 = vsel %vm943, %v922, %v923
    %v962 = vsel %vm943, %v921, %v922
    %v963 = vsel %vm943, %v920, %v921
    %v964 = vsel %vm943, %v919, %v920
    %v965 = vsel %vm943, %v918, %v919
    %v966 = vsel %vm943, %v917, %v918
    %v967 = vsel %vm943, %v916, %v917
    %v968 = vsel %vm943, %v915, %v916
    %v969 = vsel %vm943, %v914, %v915
    %v970 = vsel %vm943, %v913, %v914
    %v971 = vsel %vm943, %v912, %v913
    %v972 = vsel %vm943, %v911, %v912
    %v973 = vsel %vm943, %v910, %v911
    %v974 = vsel %vm943, %v909, %v910
    %v975 = vsel %vm943, %v940, %v909
    %v976 = vadd.f32 %v975, 0.0
    %v977 = vadd.f32 %v974, 0.0
    %v978 = vadd.f32 %v973, 0.0
    %v979 = vadd.f32 %v972, 0.0
    %v980 = vadd.f32 %v971, 0.0
    %v981 = vadd.f32 %v970, 0.0
    %v982 = vadd.f32 %v969, 0.0
    %v983 = vadd.f32 %v968, 0.0
    %v984 = vadd.f32 %v967, 0.0
    %v985 = vadd.f32 %v966, 0.0
    %v986 = vadd.f32 %v965, 0.0
    %v987 = vadd.f32 %v964, 0.0
    %v988 = vadd.f32 %v963, 0.0
    %v989 = vadd.f32 %v962, 0.0
    %v990 = vadd.f32 %v961, 0.0
    %v991 = vadd.f32 %v960, 0.0
    %v992 = vadd.f32 %v959, 0.0
    %v993 = vadd.f32 %v958, 0.0
    %v994 = vadd.f32 %v957, 0.0
    %v995 = vadd.f32 %v956, 0.0
    %v996 = vadd.f32 %v955, 0.0
    %v997 = vadd.f32 %v954, 0.0
    %v998 = vadd.f32 %v953, 0.0
    %v999 = vadd.f32 %v952, 0.0
    %v1000 = vadd.f32 %v951, 0.0
    %v1001 = vadd.f32 %v950, 0.0
    %v1002 = vadd.f32 %v949, 0.0
    %v1003 = vadd.f32 %v948, 0.0
    %v1004 = vadd.f32 %v947, 0.0
    %v1005 = vadd.f32 %v946, 0.0
    %v1006 = vadd.f32 %v945, 0.0
    %v1007 = vadd.f32 %v944, 0.0
    %s1008 = scalar_lea.vmem [#allocation8], 192
    %v1009 = vld [vmem:[%s1008] sm:$0xf]
    %v1010 = vld [vmem:[%s1008 + $0x4] sm:$0xf]
    %v1011 = vld [vmem:[%s1008 + $0x8] sm:$0xf]
    %v1012 = vld [vmem:[%s1008 + $0xc] sm:$0xf]
    %v1013 = vld [vmem:[%s1008 + $0x10] sm:$0xf]
    %v1014 = vld [vmem:[%s1008 + $0x14] sm:$0xf]
    %v1015 = vld [vmem:[%s1008 + $0x18] sm:$0xf]
    %v1016 = vld [vmem:[%s1008 + $0x1c] sm:$0xf]
    %v1017 = vld [vmem:[%s1008 + $0x20] sm:$0xf]
    %v1018 = vld [vmem:[%s1008 + $0x24] sm:$0xf]
    %v1019 = vld [vmem:[%s1008 + $0x28] sm:$0xf]
    %v1020 = vld [vmem:[%s1008 + $0x2c] sm:$0xf]
    %v1021 = vld [vmem:[%s1008 + $0x30] sm:$0xf]
    %v1022 = vld [vmem:[%s1008 + $0x34] sm:$0xf]
    %v1023 = vld [vmem:[%s1008 + $0x38] sm:$0xf]
    %v1024 = vld [vmem:[%s1008 + $0x3c] sm:$0xf]
    %v1025 = vld [vmem:[%s1008 + $0x40] sm:$0xf]
    %v1026 = vld [vmem:[%s1008 + $0x44] sm:$0xf]
    %v1027 = vld [vmem:[%s1008 + $0x48] sm:$0xf]
    %v1028 = vld [vmem:[%s1008 + $0x4c] sm:$0xf]
    %v1029 = vld [vmem:[%s1008 + $0x50] sm:$0xf]
    %v1030 = vld [vmem:[%s1008 + $0x54] sm:$0xf]
    %v1031 = vld [vmem:[%s1008 + $0x58] sm:$0xf]
    %v1032 = vld [vmem:[%s1008 + $0x5c] sm:$0xf]
    %v1033 = vld [vmem:[%s1008 + $0x60] sm:$0xf]
    %v1034 = vld [vmem:[%s1008 + $0x64] sm:$0xf]
    %v1035 = vld [vmem:[%s1008 + $0x68] sm:$0xf]
    %v1036 = vld [vmem:[%s1008 + $0x6c] sm:$0xf]
    %v1037 = vld [vmem:[%s1008 + $0x70] sm:$0xf]
    %v1038 = vld [vmem:[%s1008 + $0x74] sm:$0xf]
    %v1039 = vld [vmem:[%s1008 + $0x78] sm:$0xf]
    %v1040 = vld [vmem:[%s1008 + $0x7c] sm:$0xf]
    %v1041 = vld [vmem:[%s1008 + $0x80] sm:$0xf]
    %v1042 = vld [vmem:[%s1008 + $0x84] sm:$0xf]
    %v1043 = vld [vmem:[%s1008 + $0x88] sm:$0xf]
    %v1044 = vld [vmem:[%s1008 + $0x8c] sm:$0xf]
    %v1045 = vld [vmem:[%s1008 + $0x90] sm:$0xf]
    %v1046 = vld [vmem:[%s1008 + $0x94] sm:$0xf]
    %v1047 = vld [vmem:[%s1008 + $0x98] sm:$0xf]
    %v1048 = vld [vmem:[%s1008 + $0x9c] sm:$0xf]
    %v1049 = vld [vmem:[%s1008 + $0xa0] sm:$0xf]
    %v1050 = vld [vmem:[%s1008 + $0xa4] sm:$0xf]
    %v1051 = vld [vmem:[%s1008 + $0xa8] sm:$0xf]
    %v1052 = vld [vmem:[%s1008 + $0xac] sm:$0xf]
    %v1053 = vld [vmem:[%s1008 + $0xb0] sm:$0xf]
    %v1054 = vld [vmem:[%s1008 + $0xb4] sm:$0xf]
    %v1055 = vld [vmem:[%s1008 + $0xb8] sm:$0xf]
    %v1056 = vld [vmem:[%s1008 + $0xbc] sm:$0xf]
    %v1105 = vunpack.c.l.b16 %v1009
    %v1106 = vunpack.c.l.b16 %v1010
    %v1107 = vunpack.c.l.b16 %v1011
    %v1108 = vunpack.c.l.b16 %v1012
    %v1109 = vunpack.c.l.b16 %v1013
    %v1110 = vunpack.c.l.b16 %v1014
    %v1111 = vunpack.c.l.b16 %v1015
    %v1112 = vunpack.c.l.b16 %v1016
    %v1113 = vunpack.c.l.b16 %v1017
    %v1114 = vunpack.c.l.b16 %v1018
    %v1115 = vunpack.c.l.b16 %v1019
    %v1116 = vunpack.c.l.b16 %v1020
    %v1117 = vunpack.c.l.b16 %v1021
    %v1118 = vunpack.c.l.b16 %v1022
    %v1119 = vunpack.c.l.b16 %v1023
    %v1120 = vunpack.c.l.b16 %v1024
    %v1121 = vunpack.c.l.b16 %v1025
    %v1122 = vunpack.c.l.b16 %v1026
    %v1123 = vunpack.c.l.b16 %v1027
    %v1124 = vunpack.c.l.b16 %v1028
    %v1125 = vunpack.c.l.b16 %v1029
    %v1126 = vunpack.c.l.b16 %v1030
    %v1127 = vunpack.c.l.b16 %v1031
    %v1128 = vunpack.c.l.b16 %v1032
    %v1129 = vunpack.c.l.b16 %v1033
    %v1130 = vunpack.c.l.b16 %v1034
    %v1131 = vunpack.c.l.b16 %v1035
    %v1132 = vunpack.c.l.b16 %v1036
    %v1133 = vunpack.c.l.b16 %v1037
    %v1134 = vunpack.c.l.b16 %v1038
    %v1135 = vunpack.c.l.b16 %v1039
    %v1136 = vunpack.c.l.b16 %v1040
    %v1137 = vunpack.c.l.b16 %v1041
    %v1138 = vunpack.c.l.b16 %v1042
    %v1139 = vunpack.c.l.b16 %v1043
    %v1140 = vunpack.c.l.b16 %v1044
    %v1141 = vunpack.c.l.b16 %v1045
    %v1142 = vunpack.c.l.b16 %v1046
    %v1143 = vunpack.c.l.b16 %v1047
    %v1144 = vunpack.c.l.b16 %v1048
    %v1145 = vunpack.c.l.b16 %v1049
    %v1146 = vunpack.c.l.b16 %v1050
    %v1147 = vunpack.c.l.b16 %v1051
    %v1148 = vunpack.c.l.b16 %v1052
    %v1149 = vunpack.c.l.b16 %v1053
    %v1150 = vunpack.c.l.b16 %v1054
    %v1151 = vunpack.c.l.b16 %v1055
    %v1152 = vunpack.c.l.b16 %v1056
    %v1153 = vpack.c.b16 %v1106, %v1105
    %v1154 = vpack.c.b16 %v1108, %v1107
    %v1155 = vpack.c.b16 %v1110, %v1109
    %v1156 = vpack.c.b16 %v1112, %v1111
    %v1157 = vpack.c.b16 %v1114, %v1113
    %v1158 = vpack.c.b16 %v1116, %v1115
    %v1159 = vpack.c.b16 %v1118, %v1117
    %v1160 = vpack.c.b16 %v1120, %v1119
    %v1161 = vpack.c.b16 %v1122, %v1121
    %v1162 = vpack.c.b16 %v1124, %v1123
    %v1163 = vpack.c.b16 %v1126, %v1125
    %v1164 = vpack.c.b16 %v1128, %v1127
    %v1165 = vpack.c.b16 %v1130, %v1129
    %v1166 = vpack.c.b16 %v1132, %v1131
    %v1167 = vpack.c.b16 %v1134, %v1133
    %v1168 = vpack.c.b16 %v1136, %v1135
    %v1169 = vpack.c.b16 %v1138, %v1137
    %v1170 = vpack.c.b16 %v1140, %v1139
    %v1171 = vpack.c.b16 %v1142, %v1141
    %v1172 = vpack.c.b16 %v1144, %v1143
    %v1173 = vpack.c.b16 %v1146, %v1145
    %v1174 = vpack.c.b16 %v1148, %v1147
    %v1175 = vpack.c.b16 %v1150, %v1149
    %v1176 = vpack.c.b16 %v1152, %v1151
    %1201 = vmatpush.bf16.msra.mxu0 %v1160
    %1202 = vmatpush.bf16.msra.mxu0 %v1159
    %1203 = vmatpush.bf16.msra.mxu0 %v1158
    %1204 = vmatpush.bf16.msra.mxu0 %v1157
    %1205 = vmatpush.bf16.msra.mxu0 %v1156
    %1206 = vmatpush.bf16.msra.mxu0 %v1155
    %1207 = vmatpush.bf16.msra.mxu0 %v1154
    %1208 = vmatpush.bf16.msra.mxu0 %v1153
    %1209 = vmatmul.bf16.gmra.mxu0 %v402
    %v1210 = vpop.f32.mrf.mxu0
    %v1211 = vadd.f32 0.0, %v1210
    %v1212 = vpop.f32.mrf.mxu0
    %v1213 = vadd.f32 0.0, %v1212
    %1214 = vmatmul.bf16.gmra.mxu0 %v405
    %v1215 = vpop.f32.mrf.mxu0
    %v1216 = vadd.f32 0.0, %v1215
    %v1217 = vpop.f32.mrf.mxu0
    %v1218 = vadd.f32 0.0, %v1217
    %1219 = vmatmul.bf16.gmra.mxu0 %v408
    %v1220 = vpop.f32.mrf.mxu0
    %v1221 = vadd.f32 0.0, %v1220
    %v1222 = vpop.f32.mrf.mxu0
    %v1223 = vadd.f32 0.0, %v1222
    %1224 = vmatmul.bf16.gmra.mxu0 %v411
    %v1225 = vpop.f32.mrf.mxu0
    %v1226 = vadd.f32 0.0, %v1225
    %v1227 = vpop.f32.mrf.mxu0
    %v1228 = vadd.f32 0.0, %v1227
    %1229 = vmatmul.bf16.gmra.mxu0 %v414
    %v1230 = vpop.f32.mrf.mxu0
    %v1231 = vadd.f32 0.0, %v1230
    %v1232 = vpop.f32.mrf.mxu0
    %v1233 = vadd.f32 0.0, %v1232
    %1234 = vmatmul.bf16.gmra.mxu0 %v417
    %v1235 = vpop.f32.mrf.mxu0
    %v1236 = vadd.f32 0.0, %v1235
    %v1237 = vpop.f32.mrf.mxu0
    %v1238 = vadd.f32 0.0, %v1237
    %1239 = vmatmul.bf16.gmra.mxu0 %v420
    %v1240 = vpop.f32.mrf.mxu0
    %v1241 = vadd.f32 0.0, %v1240
    %v1242 = vpop.f32.mrf.mxu0
    %v1243 = vadd.f32 0.0, %v1242
    %1244 = vmatmul.bf16.gmra.mxu0 %v423
    %v1245 = vpop.f32.mrf.mxu0
    %v1246 = vadd.f32 0.0, %v1245
    %v1247 = vpop.f32.mrf.mxu0
    %v1248 = vadd.f32 0.0, %v1247
    %1249 = vmatmul.bf16.gmra.mxu0 %v426
    %v1250 = vpop.f32.mrf.mxu0
    %v1251 = vadd.f32 0.0, %v1250
    %v1252 = vpop.f32.mrf.mxu0
    %v1253 = vadd.f32 0.0, %v1252
    %1254 = vmatmul.bf16.gmra.mxu0 %v429
    %v1255 = vpop.f32.mrf.mxu0
    %v1256 = vadd.f32 0.0, %v1255
    %v1257 = vpop.f32.mrf.mxu0
    %v1258 = vadd.f32 0.0, %v1257
    %1259 = vmatmul.bf16.gmra.mxu0 %v432
    %v1260 = vpop.f32.mrf.mxu0
    %v1261 = vadd.f32 0.0, %v1260
    %v1262 = vpop.f32.mrf.mxu0
    %v1263 = vadd.f32 0.0, %v1262
    %1264 = vmatmul.bf16.gmra.mxu0 %v435
    %v1265 = vpop.f32.mrf.mxu0
    %v1266 = vadd.f32 0.0, %v1265
    %v1267 = vpop.f32.mrf.mxu0
    %v1268 = vadd.f32 0.0, %v1267
    %1269 = vmatmul.bf16.gmra.mxu0 %v438
    %v1270 = vpop.f32.mrf.mxu0
    %v1271 = vadd.f32 0.0, %v1270
    %v1272 = vpop.f32.mrf.mxu0
    %v1273 = vadd.f32 0.0, %v1272
    %1274 = vmatmul.bf16.gmra.mxu0 %v441
    %v1275 = vpop.f32.mrf.mxu0
    %v1276 = vadd.f32 0.0, %v1275
    %v1277 = vpop.f32.mrf.mxu0
    %v1278 = vadd.f32 0.0, %v1277
    %1279 = vmatmul.bf16.gmra.mxu0 %v444
    %v1280 = vpop.f32.mrf.mxu0
    %v1281 = vadd.f32 0.0, %v1280
    %v1282 = vpop.f32.mrf.mxu0
    %v1283 = vadd.f32 0.0, %v1282
    %1284 = vmatmul.bf16.gmra.mxu0 %v447
    %v1285 = vpop.f32.mrf.mxu0
    %v1286 = vadd.f32 0.0, %v1285
    %v1287 = vpop.f32.mrf.mxu0
    %v1288 = vadd.f32 0.0, %v1287
    %1289 = vdwg.mxu0
    %1290 = vmatpush.bf16.msra.mxu0 %v1168
    %1291 = vmatpush.bf16.msra.mxu0 %v1167
    %1292 = vmatpush.bf16.msra.mxu0 %v1166
    %1293 = vmatpush.bf16.msra.mxu0 %v1165
    %1294 = vmatpush.bf16.msra.mxu0 %v1164
    %1295 = vmatpush.bf16.msra.mxu0 %v1163
    %1296 = vmatpush.bf16.msra.mxu0 %v1162
    %1297 = vmatpush.bf16.msra.mxu0 %v1161
    %1298 = vmatmul.bf16.gmra.mxu0 %v403
    %v1299 = vpop.f32.mrf.mxu0
    %v1300 = vadd.f32 %v1211, %v1299
    %v1301 = vpop.f32.mrf.mxu0
    %v1302 = vadd.f32 %v1213, %v1301
    %1303 = vmatmul.bf16.gmra.mxu0 %v406
    %v1304 = vpop.f32.mrf.mxu0
    %v1305 = vadd.f32 %v1216, %v1304
    %v1306 = vpop.f32.mrf.mxu0
    %v1307 = vadd.f32 %v1218, %v1306
    %1308 = vmatmul.bf16.gmra.mxu0 %v409
    %v1309 = vpop.f32.mrf.mxu0
    %v1310 = vadd.f32 %v1221, %v1309
    %v1311 = vpop.f32.mrf.mxu0
    %v1312 = vadd.f32 %v1223, %v1311
    %1313 = vmatmul.bf16.gmra.mxu0 %v412
    %v1314 = vpop.f32.mrf.mxu0
    %v1315 = vadd.f32 %v1226, %v1314
    %v1316 = vpop.f32.mrf.mxu0
    %v1317 = vadd.f32 %v1228, %v1316
    %1318 = vmatmul.bf16.gmra.mxu0 %v415
    %v1319 = vpop.f32.mrf.mxu0
    %v1320 = vadd.f32 %v1231, %v1319
    %v1321 = vpop.f32.mrf.mxu0
    %v1322 = vadd.f32 %v1233, %v1321
    %1323 = vmatmul.bf16.gmra.mxu0 %v418
    %v1324 = vpop.f32.mrf.mxu0
    %v1325 = vadd.f32 %v1236, %v1324
    %v1326 = vpop.f32.mrf.mxu0
    %v1327 = vadd.f32 %v1238, %v1326
    %1328 = vmatmul.bf16.gmra.mxu0 %v421
    %v1329 = vpop.f32.mrf.mxu0
    %v1330 = vadd.f32 %v1241, %v1329
    %v1331 = vpop.f32.mrf.mxu0
    %v1332 = vadd.f32 %v1243, %v1331
    %1333 = vmatmul.bf16.gmra.mxu0 %v424
    %v1334 = vpop.f32.mrf.mxu0
    %v1335 = vadd.f32 %v1246, %v1334
    %v1336 = vpop.f32.mrf.mxu0
    %v1337 = vadd.f32 %v1248, %v1336
    %1338 = vmatmul.bf16.gmra.mxu0 %v427
    %v1339 = vpop.f32.mrf.mxu0
    %v1340 = vadd.f32 %v1251, %v1339
    %v1341 = vpop.f32.mrf.mxu0
    %v1342 = vadd.f32 %v1253, %v1341
    %1343 = vmatmul.bf16.gmra.mxu0 %v430
    %v1344 = vpop.f32.mrf.mxu0
    %v1345 = vadd.f32 %v1256, %v1344
    %v1346 = vpop.f32.mrf.mxu0
    %v1347 = vadd.f32 %v1258, %v1346
    %1348 = vmatmul.bf16.gmra.mxu0 %v433
    %v1349 = vpop.f32.mrf.mxu0
    %v1350 = vadd.f32 %v1261, %v1349
    %v1351 = vpop.f32.mrf.mxu0
    %v1352 = vadd.f32 %v1263, %v1351
    %1353 = vmatmul.bf16.gmra.mxu0 %v436
    %v1354 = vpop.f32.mrf.mxu0
    %v1355 = vadd.f32 %v1266, %v1354
    %v1356 = vpop.f32.mrf.mxu0
    %v1357 = vadd.f32 %v1268, %v1356
    %1358 = vmatmul.bf16.gmra.mxu0 %v439
    %v1359 = vpop.f32.mrf.mxu0
    %v1360 = vadd.f32 %v1271, %v1359
    %v1361 = vpop.f32.mrf.mxu0
    %v1362 = vadd.f32 %v1273, %v1361
    %1363 = vmatmul.bf16.gmra.mxu0 %v442
    %v1364 = vpop.f32.mrf.mxu0
    %v1365 = vadd.f32 %v1276, %v1364
    %v1366 = vpop.f32.mrf.mxu0
    %v1367 = vadd.f32 %v1278, %v1366
    %1368 = vmatmul.bf16.gmra.mxu0 %v445
    %v1369 = vpop.f32.mrf.mxu0
    %v1370 = vadd.f32 %v1281, %v1369
    %v1371 = vpop.f32.mrf.mxu0
    %v1372 = vadd.f32 %v1283, %v1371
    %1373 = vmatmul.bf16.gmra.mxu0 %v448
    %v1374 = vpop.f32.mrf.mxu0
    %v1375 = vadd.f32 %v1286, %v1374
    %v1376 = vpop.f32.mrf.mxu0
    %v1377 = vadd.f32 %v1288, %v1376
    %1378 = vdwg.mxu0
    %1379 = vmatpush.bf16.msra.mxu0 %v1176
    %1380 = vmatpush.bf16.msra.mxu0 %v1175
    %1381 = vmatpush.bf16.msra.mxu0 %v1174
    %1382 = vmatpush.bf16.msra.mxu0 %v1173
    %1383 = vmatpush.bf16.msra.mxu0 %v1172
    %1384 = vmatpush.bf16.msra.mxu0 %v1171
    %1385 = vmatpush.bf16.msra.mxu0 %v1170
    %1386 = vmatpush.bf16.msra.mxu0 %v1169
    %1387 = vmatmul.bf16.gmra.mxu0 %v404
    %v1388 = vpop.f32.mrf.mxu0
    %v1389 = vadd.f32 %v1300, %v1388
    %v1390 = vpop.f32.mrf.mxu0
    %v1391 = vadd.f32 %v1302, %v1390
    %1392 = vmatmul.bf16.gmra.mxu0 %v407
    %v1393 = vpop.f32.mrf.mxu0
    %v1394 = vadd.f32 %v1305, %v1393
    %v1395 = vpop.f32.mrf.mxu0
    %v1396 = vadd.f32 %v1307, %v1395
    %1397 = vmatmul.bf16.gmra.mxu0 %v410
    %v1398 = vpop.f32.mrf.mxu0
    %v1399 = vadd.f32 %v1310, %v1398
    %v1400 = vpop.f32.mrf.mxu0
    %v1401 = vadd.f32 %v1312, %v1400
    %1402 = vmatmul.bf16.gmra.mxu0 %v413
    %v1403 = vpop.f32.mrf.mxu0
    %v1404 = vadd.f32 %v1315, %v1403
    %v1405 = vpop.f32.mrf.mxu0
    %v1406 = vadd.f32 %v1317, %v1405
    %1407 = vmatmul.bf16.gmra.mxu0 %v416
    %v1408 = vpop.f32.mrf.mxu0
    %v1409 = vadd.f32 %v1320, %v1408
    %v1410 = vpop.f32.mrf.mxu0
    %v1411 = vadd.f32 %v1322, %v1410
    %1412 = vmatmul.bf16.gmra.mxu0 %v419
    %v1413 = vpop.f32.mrf.mxu0
    %v1414 = vadd.f32 %v1325, %v1413
    %v1415 = vpop.f32.mrf.mxu0
    %v1416 = vadd.f32 %v1327, %v1415
    %1417 = vmatmul.bf16.gmra.mxu0 %v422
    %v1418 = vpop.f32.mrf.mxu0
    %v1419 = vadd.f32 %v1330, %v1418
    %v1420 = vpop.f32.mrf.mxu0
    %v1421 = vadd.f32 %v1332, %v1420
    %1422 = vmatmul.bf16.gmra.mxu0 %v425
    %v1423 = vpop.f32.mrf.mxu0
    %v1424 = vadd.f32 %v1335, %v1423
    %v1425 = vpop.f32.mrf.mxu0
    %v1426 = vadd.f32 %v1337, %v1425
    %1427 = vmatmul.bf16.gmra.mxu0 %v428
    %v1428 = vpop.f32.mrf.mxu0
    %v1429 = vadd.f32 %v1340, %v1428
    %v1430 = vpop.f32.mrf.mxu0
    %v1431 = vadd.f32 %v1342, %v1430
    %1432 = vmatmul.bf16.gmra.mxu0 %v431
    %v1433 = vpop.f32.mrf.mxu0
    %v1434 = vadd.f32 %v1345, %v1433
    %v1435 = vpop.f32.mrf.mxu0
    %v1436 = vadd.f32 %v1347, %v1435
    %1437 = vmatmul.bf16.gmra.mxu0 %v434
    %v1438 = vpop.f32.mrf.mxu0
    %v1439 = vadd.f32 %v1350, %v1438
    %v1440 = vpop.f32.mrf.mxu0
    %v1441 = vadd.f32 %v1352, %v1440
    %1442 = vmatmul.bf16.gmra.mxu0 %v437
    %v1443 = vpop.f32.mrf.mxu0
    %v1444 = vadd.f32 %v1355, %v1443
    %v1445 = vpop.f32.mrf.mxu0
    %v1446 = vadd.f32 %v1357, %v1445
    %1447 = vmatmul.bf16.gmra.mxu0 %v440
    %v1448 = vpop.f32.mrf.mxu0
    %v1449 = vadd.f32 %v1360, %v1448
    %v1450 = vpop.f32.mrf.mxu0
    %v1451 = vadd.f32 %v1362, %v1450
    %1452 = vmatmul.bf16.gmra.mxu0 %v443
    %v1453 = vpop.f32.mrf.mxu0
    %v1454 = vadd.f32 %v1365, %v1453
    %v1455 = vpop.f32.mrf.mxu0
    %v1456 = vadd.f32 %v1367, %v1455
    %1457 = vmatmul.bf16.gmra.mxu0 %v446
    %v1458 = vpop.f32.mrf.mxu0
    %v1459 = vadd.f32 %v1370, %v1458
    %v1460 = vpop.f32.mrf.mxu0
    %v1461 = vadd.f32 %v1372, %v1460
    %1462 = vmatmul.bf16.gmra.mxu0 %v449
    %v1463 = vpop.f32.mrf.mxu0
    %v1464 = vadd.f32 %v1375, %v1463
    %v1465 = vpop.f32.mrf.mxu0
    %v1466 = vadd.f32 %v1377, %v1465
    %1467 = vdwg.mxu0
    %v1468 = vadd.f32 %v976, %v1389
    %v1469 = vadd.f32 %v977, %v1391
    %v1470 = vadd.f32 %v978, %v1394
    %v1471 = vadd.f32 %v979, %v1396
    %v1472 = vadd.f32 %v980, %v1399
    %v1473 = vadd.f32 %v981, %v1401
    %v1474 = vadd.f32 %v982, %v1404
    %v1475 = vadd.f32 %v983, %v1406
    %v1476 = vadd.f32 %v984, %v1409
    %v1477 = vadd.f32 %v985, %v1411
    %v1478 = vadd.f32 %v986, %v1414
    %v1479 = vadd.f32 %v987, %v1416
    %v1480 = vadd.f32 %v988, %v1419
    %v1481 = vadd.f32 %v989, %v1421
    %v1482 = vadd.f32 %v990, %v1424
    %v1483 = vadd.f32 %v991, %v1426
    %v1484 = vadd.f32 %v992, %v1429
    %v1485 = vadd.f32 %v993, %v1431
    %v1486 = vadd.f32 %v994, %v1434
    %v1487 = vadd.f32 %v995, %v1436
    %v1488 = vadd.f32 %v996, %v1439
    %v1489 = vadd.f32 %v997, %v1441
    %v1490 = vadd.f32 %v998, %v1444
    %v1491 = vadd.f32 %v999, %v1446
    %v1492 = vadd.f32 %v1000, %v1449
    %v1493 = vadd.f32 %v1001, %v1451
    %v1494 = vadd.f32 %v1002, %v1454
    %v1495 = vadd.f32 %v1003, %v1456
    %v1496 = vadd.f32 %v1004, %v1459
    %v1497 = vadd.f32 %v1005, %v1461
    %v1498 = vadd.f32 %v1006, %v1464
    %v1499 = vadd.f32 %v1007, %v1466
    %s1500 = scalar_lea.vmem [#allocation8], 384
    %v1501 = vld [vmem:[%s1500] sm:$0xf]
    %v1502 = vld [vmem:[%s1500 + $0x4] sm:$0xf]
    %v1503 = vld [vmem:[%s1500 + $0x8] sm:$0xf]
    %v1504 = vld [vmem:[%s1500 + $0xc] sm:$0xf]
    %v1505 = vld [vmem:[%s1500 + $0x10] sm:$0xf]
    %v1506 = vld [vmem:[%s1500 + $0x14] sm:$0xf]
    %v1507 = vld [vmem:[%s1500 + $0x18] sm:$0xf]
    %v1508 = vld [vmem:[%s1500 + $0x1c] sm:$0xf]
    %v1509 = vld [vmem:[%s1500 + $0x20] sm:$0xf]
    %v1510 = vld [vmem:[%s1500 + $0x24] sm:$0xf]
    %v1511 = vld [vmem:[%s1500 + $0x28] sm:$0xf]
    %v1512 = vld [vmem:[%s1500 + $0x2c] sm:$0xf]
    %v1513 = vld [vmem:[%s1500 + $0x30] sm:$0xf]
    %v1514 = vld [vmem:[%s1500 + $0x34] sm:$0xf]
    %v1515 = vld [vmem:[%s1500 + $0x38] sm:$0xf]
    %v1516 = vld [vmem:[%s1500 + $0x3c] sm:$0xf]
    %v1517 = vld [vmem:[%s1500 + $0x40] sm:$0xf]
    %v1518 = vld [vmem:[%s1500 + $0x44] sm:$0xf]
    %v1519 = vld [vmem:[%s1500 + $0x48] sm:$0xf]
    %v1520 = vld [vmem:[%s1500 + $0x4c] sm:$0xf]
    %v1521 = vld [vmem:[%s1500 + $0x50] sm:$0xf]
    %v1522 = vld [vmem:[%s1500 + $0x54] sm:$0xf]
    %v1523 = vld [vmem:[%s1500 + $0x58] sm:$0xf]
    %v1524 = vld [vmem:[%s1500 + $0x5c] sm:$0xf]
    %v1525 = vld [vmem:[%s1500 + $0x60] sm:$0xf]
    %v1526 = vld [vmem:[%s1500 + $0x64] sm:$0xf]
    %v1527 = vld [vmem:[%s1500 + $0x68] sm:$0xf]
    %v1528 = vld [vmem:[%s1500 + $0x6c] sm:$0xf]
    %v1529 = vld [vmem:[%s1500 + $0x70] sm:$0xf]
    %v1530 = vld [vmem:[%s1500 + $0x74] sm:$0xf]
    %v1531 = vld [vmem:[%s1500 + $0x78] sm:$0xf]
    %v1532 = vld [vmem:[%s1500 + $0x7c] sm:$0xf]
    %v1533 = vld [vmem:[%s1500 + $0x80] sm:$0xf]
    %v1534 = vld [vmem:[%s1500 + $0x84] sm:$0xf]
    %v1535 = vld [vmem:[%s1500 + $0x88] sm:$0xf]
    %v1536 = vld [vmem:[%s1500 + $0x8c] sm:$0xf]
    %v1537 = vld [vmem:[%s1500 + $0x90] sm:$0xf]
    %v1538 = vld [vmem:[%s1500 + $0x94] sm:$0xf]
    %v1539 = vld [vmem:[%s1500 + $0x98] sm:$0xf]
    %v1540 = vld [vmem:[%s1500 + $0x9c] sm:$0xf]
    %v1541 = vld [vmem:[%s1500 + $0xa0] sm:$0xf]
    %v1542 = vld [vmem:[%s1500 + $0xa4] sm:$0xf]
    %v1543 = vld [vmem:[%s1500 + $0xa8] sm:$0xf]
    %v1544 = vld [vmem:[%s1500 + $0xac] sm:$0xf]
    %v1545 = vld [vmem:[%s1500 + $0xb0] sm:$0xf]
    %v1546 = vld [vmem:[%s1500 + $0xb4] sm:$0xf]
    %v1547 = vld [vmem:[%s1500 + $0xb8] sm:$0xf]
    %v1548 = vld [vmem:[%s1500 + $0xbc] sm:$0xf]
    %v1597 = vunpack.c.l.b16 %v1501
    %v1598 = vunpack.c.l.b16 %v1502
    %v1599 = vunpack.c.l.b16 %v1503
    %v1600 = vunpack.c.l.b16 %v1504
    %v1601 = vunpack.c.l.b16 %v1505
    %v1602 = vunpack.c.l.b16 %v1506
    %v1603 = vunpack.c.l.b16 %v1507
    %v1604 = vunpack.c.l.b16 %v1508
    %v1605 = vunpack.c.l.b16 %v1509
    %v1606 = vunpack.c.l.b16 %v1510
    %v1607 = vunpack.c.l.b16 %v1511
    %v1608 = vunpack.c.l.b16 %v1512
    %v1609 = vunpack.c.l.b16 %v1513
    %v1610 = vunpack.c.l.b16 %v1514
    %v1611 = vunpack.c.l.b16 %v1515
    %v1612 = vunpack.c.l.b16 %v1516
    %v1613 = vunpack.c.l.b16 %v1517
    %v1614 = vunpack.c.l.b16 %v1518
    %v1615 = vunpack.c.l.b16 %v1519
    %v1616 = vunpack.c.l.b16 %v1520
    %v1617 = vunpack.c.l.b16 %v1521
    %v1618 = vunpack.c.l.b16 %v1522
    %v1619 = vunpack.c.l.b16 %v1523
    %v1620 = vunpack.c.l.b16 %v1524
    %v1621 = vunpack.c.l.b16 %v1525
    %v1622 = vunpack.c.l.b16 %v1526
    %v1623 = vunpack.c.l.b16 %v1527
    %v1624 = vunpack.c.l.b16 %v1528
    %v1625 = vunpack.c.l.b16 %v1529
    %v1626 = vunpack.c.l.b16 %v1530
    %v1627 = vunpack.c.l.b16 %v1531
    %v1628 = vunpack.c.l.b16 %v1532
    %v1629 = vunpack.c.l.b16 %v1533
    %v1630 = vunpack.c.l.b16 %v1534
    %v1631 = vunpack.c.l.b16 %v1535
    %v1632 = vunpack.c.l.b16 %v1536
    %v1633 = vunpack.c.l.b16 %v1537
    %v1634 = vunpack.c.l.b16 %v1538
    %v1635 = vunpack.c.l.b16 %v1539
    %v1636 = vunpack.c.l.b16 %v1540
    %v1637 = vunpack.c.l.b16 %v1541
    %v1638 = vunpack.c.l.b16 %v1542
    %v1639 = vunpack.c.l.b16 %v1543
    %v1640 = vunpack.c.l.b16 %v1544
    %v1641 = vunpack.c.l.b16 %v1545
    %v1642 = vunpack.c.l.b16 %v1546
    %v1643 = vunpack.c.l.b16 %v1547
    %v1644 = vunpack.c.l.b16 %v1548
    %v1645 = vpack.c.b16 %v1598, %v1597
    %v1646 = vpack.c.b16 %v1600, %v1599
    %v1647 = vpack.c.b16 %v1602, %v1601
    %v1648 = vpack.c.b16 %v1604, %v1603
    %v1649 = vpack.c.b16 %v1606, %v1605
    %v1650 = vpack.c.b16 %v1608, %v1607
    %v1651 = vpack.c.b16 %v1610, %v1609
    %v1652 = vpack.c.b16 %v1612, %v1611
    %v1653 = vpack.c.b16 %v1614, %v1613
    %v1654 = vpack.c.b16 %v1616, %v1615
    %v1655 = vpack.c.b16 %v1618, %v1617
    %v1656 = vpack.c.b16 %v1620, %v1619
    %v1657 = vpack.c.b16 %v1622, %v1621
    %v1658 = vpack.c.b16 %v1624, %v1623
    %v1659 = vpack.c.b16 %v1626, %v1625
    %v1660 = vpack.c.b16 %v1628, %v1627
    %v1661 = vpack.c.b16 %v1630, %v1629
    %v1662 = vpack.c.b16 %v1632, %v1631
    %v1663 = vpack.c.b16 %v1634, %v1633
    %v1664 = vpack.c.b16 %v1636, %v1635
    %v1665 = vpack.c.b16 %v1638, %v1637
    %v1666 = vpack.c.b16 %v1640, %v1639
    %v1667 = vpack.c.b16 %v1642, %v1641
    %v1668 = vpack.c.b16 %v1644, %v1643
    %1693 = vmatpush.bf16.msra.mxu0 %v1652
    %1694 = vmatpush.bf16.msra.mxu0 %v1651
    %1695 = vmatpush.bf16.msra.mxu0 %v1650
    %1696 = vmatpush.bf16.msra.mxu0 %v1649
    %1697 = vmatpush.bf16.msra.mxu0 %v1648
    %1698 = vmatpush.bf16.msra.mxu0 %v1647
    %1699 = vmatpush.bf16.msra.mxu0 %v1646
    %1700 = vmatpush.bf16.msra.mxu0 %v1645
    %1701 = vmatmul.bf16.gmra.mxu0 %v402
    %v1702 = vpop.f32.mrf.mxu0
    %v1703 = vadd.f32 0.0, %v1702
    %v1704 = vpop.f32.mrf.mxu0
    %v1705 = vadd.f32 0.0, %v1704
    %1706 = vmatmul.bf16.gmra.mxu0 %v405
    %v1707 = vpop.f32.mrf.mxu0
    %v1708 = vadd.f32 0.0, %v1707
    %v1709 = vpop.f32.mrf.mxu0
    %v1710 = vadd.f32 0.0, %v1709
    %1711 = vmatmul.bf16.gmra.mxu0 %v408
    %v1712 = vpop.f32.mrf.mxu0
    %v1713 = vadd.f32 0.0, %v1712
    %v1714 = vpop.f32.mrf.mxu0
    %v1715 = vadd.f32 0.0, %v1714
    %1716 = vmatmul.bf16.gmra.mxu0 %v411
    %v1717 = vpop.f32.mrf.mxu0
    %v1718 = vadd.f32 0.0, %v1717
    %v1719 = vpop.f32.mrf.mxu0
    %v1720 = vadd.f32 0.0, %v1719
    %1721 = vmatmul.bf16.gmra.mxu0 %v414
    %v1722 = vpop.f32.mrf.mxu0
    %v1723 = vadd.f32 0.0, %v1722
    %v1724 = vpop.f32.mrf.mxu0
    %v1725 = vadd.f32 0.0, %v1724
    %1726 = vmatmul.bf16.gmra.mxu0 %v417
    %v1727 = vpop.f32.mrf.mxu0
    %v1728 = vadd.f32 0.0, %v1727
    %v1729 = vpop.f32.mrf.mxu0
    %v1730 = vadd.f32 0.0, %v1729
    %1731 = vmatmul.bf16.gmra.mxu0 %v420
    %v1732 = vpop.f32.mrf.mxu0
    %v1733 = vadd.f32 0.0, %v1732
    %v1734 = vpop.f32.mrf.mxu0
    %v1735 = vadd.f32 0.0, %v1734
    %1736 = vmatmul.bf16.gmra.mxu0 %v423
    %v1737 = vpop.f32.mrf.mxu0
    %v1738 = vadd.f32 0.0, %v1737
    %v1739 = vpop.f32.mrf.mxu0
    %v1740 = vadd.f32 0.0, %v1739
    %1741 = vmatmul.bf16.gmra.mxu0 %v426
    %v1742 = vpop.f32.mrf.mxu0
    %v1743 = vadd.f32 0.0, %v1742
    %v1744 = vpop.f32.mrf.mxu0
    %v1745 = vadd.f32 0.0, %v1744
    %1746 = vmatmul.bf16.gmra.mxu0 %v429
    %v1747 = vpop.f32.mrf.mxu0
    %v1748 = vadd.f32 0.0, %v1747
    %v1749 = vpop.f32.mrf.mxu0
    %v1750 = vadd.f32 0.0, %v1749
    %1751 = vmatmul.bf16.gmra.mxu0 %v432
    %v1752 = vpop.f32.mrf.mxu0
    %v1753 = vadd.f32 0.0, %v1752
    %v1754 = vpop.f32.mrf.mxu0
    %v1755 = vadd.f32 0.0, %v1754
    %1756 = vmatmul.bf16.gmra.mxu0 %v435
    %v1757 = vpop.f32.mrf.mxu0
    %v1758 = vadd.f32 0.0, %v1757
    %v1759 = vpop.f32.mrf.mxu0
    %v1760 = vadd.f32 0.0, %v1759
    %1761 = vmatmul.bf16.gmra.mxu0 %v438
    %v1762 = vpop.f32.mrf.mxu0
    %v1763 = vadd.f32 0.0, %v1762
    %v1764 = vpop.f32.mrf.mxu0
    %v1765 = vadd.f32 0.0, %v1764
    %1766 = vmatmul.bf16.gmra.mxu0 %v441
    %v1767 = vpop.f32.mrf.mxu0
    %v1768 = vadd.f32 0.0, %v1767
    %v1769 = vpop.f32.mrf.mxu0
    %v1770 = vadd.f32 0.0, %v1769
    %1771 = vmatmul.bf16.gmra.mxu0 %v444
    %v1772 = vpop.f32.mrf.mxu0
    %v1773 = vadd.f32 0.0, %v1772
    %v1774 = vpop.f32.mrf.mxu0
    %v1775 = vadd.f32 0.0, %v1774
    %1776 = vmatmul.bf16.gmra.mxu0 %v447
    %v1777 = vpop.f32.mrf.mxu0
    %v1778 = vadd.f32 0.0, %v1777
    %v1779 = vpop.f32.mrf.mxu0
    %v1780 = vadd.f32 0.0, %v1779
    %1781 = vdwg.mxu0
    %1782 = vmatpush.bf16.msra.mxu0 %v1660
    %1783 = vmatpush.bf16.msra.mxu0 %v1659
    %1784 = vmatpush.bf16.msra.mxu0 %v1658
    %1785 = vmatpush.bf16.msra.mxu0 %v1657
    %1786 = vmatpush.bf16.msra.mxu0 %v1656
    %1787 = vmatpush.bf16.msra.mxu0 %v1655
    %1788 = vmatpush.bf16.msra.mxu0 %v1654
    %1789 = vmatpush.bf16.msra.mxu0 %v1653
    %1790 = vmatmul.bf16.gmra.mxu0 %v403
    %v1791 = vpop.f32.mrf.mxu0
    %v1792 = vadd.f32 %v1703, %v1791
    %v1793 = vpop.f32.mrf.mxu0
    %v1794 = vadd.f32 %v1705, %v1793
    %1795 = vmatmul.bf16.gmra.mxu0 %v406
    %v1796 = vpop.f32.mrf.mxu0
    %v1797 = vadd.f32 %v1708, %v1796
    %v1798 = vpop.f32.mrf.mxu0
    %v1799 = vadd.f32 %v1710, %v1798
    %1800 = vmatmul.bf16.gmra.mxu0 %v409
    %v1801 = vpop.f32.mrf.mxu0
    %v1802 = vadd.f32 %v1713, %v1801
    %v1803 = vpop.f32.mrf.mxu0
    %v1804 = vadd.f32 %v1715, %v1803
    %1805 = vmatmul.bf16.gmra.mxu0 %v412
    %v1806 = vpop.f32.mrf.mxu0
    %v1807 = vadd.f32 %v1718, %v1806
    %v1808 = vpop.f32.mrf.mxu0
    %v1809 = vadd.f32 %v1720, %v1808
    %1810 = vmatmul.bf16.gmra.mxu0 %v415
    %v1811 = vpop.f32.mrf.mxu0
    %v1812 = vadd.f32 %v1723, %v1811
    %v1813 = vpop.f32.mrf.mxu0
    %v1814 = vadd.f32 %v1725, %v1813
    %1815 = vmatmul.bf16.gmra.mxu0 %v418
    %v1816 = vpop.f32.mrf.mxu0
    %v1817 = vadd.f32 %v1728, %v1816
    %v1818 = vpop.f32.mrf.mxu0
    %v1819 = vadd.f32 %v1730, %v1818
    %1820 = vmatmul.bf16.gmra.mxu0 %v421
    %v1821 = vpop.f32.mrf.mxu0
    %v1822 = vadd.f32 %v1733, %v1821
    %v1823 = vpop.f32.mrf.mxu0
    %v1824 = vadd.f32 %v1735, %v1823
    %1825 = vmatmul.bf16.gmra.mxu0 %v424
    %v1826 = vpop.f32.mrf.mxu0
    %v1827 = vadd.f32 %v1738, %v1826
    %v1828 = vpop.f32.mrf.mxu0
    %v1829 = vadd.f32 %v1740, %v1828
    %1830 = vmatmul.bf16.gmra.mxu0 %v427
    %v1831 = vpop.f32.mrf.mxu0
    %v1832 = vadd.f32 %v1743, %v1831
    %v1833 = vpop.f32.mrf.mxu0
    %v1834 = vadd.f32 %v1745, %v1833
    %1835 = vmatmul.bf16.gmra.mxu0 %v430
    %v1836 = vpop.f32.mrf.mxu0
    %v1837 = vadd.f32 %v1748, %v1836
    %v1838 = vpop.f32.mrf.mxu0
    %v1839 = vadd.f32 %v1750, %v1838
    %1840 = vmatmul.bf16.gmra.mxu0 %v433
    %v1841 = vpop.f32.mrf.mxu0
    %v1842 = vadd.f32 %v1753, %v1841
    %v1843 = vpop.f32.mrf.mxu0
    %v1844 = vadd.f32 %v1755, %v1843
    %1845 = vmatmul.bf16.gmra.mxu0 %v436
    %v1846 = vpop.f32.mrf.mxu0
    %v1847 = vadd.f32 %v1758, %v1846
    %v1848 = vpop.f32.mrf.mxu0
    %v1849 = vadd.f32 %v1760, %v1848
    %1850 = vmatmul.bf16.gmra.mxu0 %v439
    %v1851 = vpop.f32.mrf.mxu0
    %v1852 = vadd.f32 %v1763, %v1851
    %v1853 = vpop.f32.mrf.mxu0
    %v1854 = vadd.f32 %v1765, %v1853
    %1855 = vmatmul.bf16.gmra.mxu0 %v442
    %v1856 = vpop.f32.mrf.mxu0
    %v1857 = vadd.f32 %v1768, %v1856
    %v1858 = vpop.f32.mrf.mxu0
    %v1859 = vadd.f32 %v1770, %v1858
    %1860 = vmatmul.bf16.gmra.mxu0 %v445
    %v1861 = vpop.f32.mrf.mxu0
    %v1862 = vadd.f32 %v1773, %v1861
    %v1863 = vpop.f32.mrf.mxu0
    %v1864 = vadd.f32 %v1775, %v1863
    %1865 = vmatmul.bf16.gmra.mxu0 %v448
    %v1866 = vpop.f32.mrf.mxu0
    %v1867 = vadd.f32 %v1778, %v1866
    %v1868 = vpop.f32.mrf.mxu0
    %v1869 = vadd.f32 %v1780, %v1868
    %1870 = vdwg.mxu0
    %1871 = vmatpush.bf16.msra.mxu0 %v1668
    %1872 = vmatpush.bf16.msra.mxu0 %v1667
    %1873 = vmatpush.bf16.msra.mxu0 %v1666
    %1874 = vmatpush.bf16.msra.mxu0 %v1665
    %1875 = vmatpush.bf16.msra.mxu0 %v1664
    %1876 = vmatpush.bf16.msra.mxu0 %v1663
    %1877 = vmatpush.bf16.msra.mxu0 %v1662
    %1878 = vmatpush.bf16.msra.mxu0 %v1661
    %1879 = vmatmul.bf16.gmra.mxu0 %v404
    %v1880 = vpop.f32.mrf.mxu0
    %v1881 = vadd.f32 %v1792, %v1880
    %v1882 = vpop.f32.mrf.mxu0
    %v1883 = vadd.f32 %v1794, %v1882
    %1884 = vmatmul.bf16.gmra.mxu0 %v407
    %v1885 = vpop.f32.mrf.mxu0
    %v1886 = vadd.f32 %v1797, %v1885
    %v1887 = vpop.f32.mrf.mxu0
    %v1888 = vadd.f32 %v1799, %v1887
    %1889 = vmatmul.bf16.gmra.mxu0 %v410
    %v1890 = vpop.f32.mrf.mxu0
    %v1891 = vadd.f32 %v1802, %v1890
    %v1892 = vpop.f32.mrf.mxu0
    %v1893 = vadd.f32 %v1804, %v1892
    %1894 = vmatmul.bf16.gmra.mxu0 %v413
    %v1895 = vpop.f32.mrf.mxu0
    %v1896 = vadd.f32 %v1807, %v1895
    %v1897 = vpop.f32.mrf.mxu0
    %v1898 = vadd.f32 %v1809, %v1897
    %1899 = vmatmul.bf16.gmra.mxu0 %v416
    %v1900 = vpop.f32.mrf.mxu0
    %v1901 = vadd.f32 %v1812, %v1900
    %v1902 = vpop.f32.mrf.mxu0
    %v1903 = vadd.f32 %v1814, %v1902
    %1904 = vmatmul.bf16.gmra.mxu0 %v419
    %v1905 = vpop.f32.mrf.mxu0
    %v1906 = vadd.f32 %v1817, %v1905
    %v1907 = vpop.f32.mrf.mxu0
    %v1908 = vadd.f32 %v1819, %v1907
    %1909 = vmatmul.bf16.gmra.mxu0 %v422
    %v1910 = vpop.f32.mrf.mxu0
    %v1911 = vadd.f32 %v1822, %v1910
    %v1912 = vpop.f32.mrf.mxu0
    %v1913 = vadd.f32 %v1824, %v1912
    %1914 = vmatmul.bf16.gmra.mxu0 %v425
    %v1915 = vpop.f32.mrf.mxu0
    %v1916 = vadd.f32 %v1827, %v1915
    %v1917 = vpop.f32.mrf.mxu0
    %v1918 = vadd.f32 %v1829, %v1917
    %1919 = vmatmul.bf16.gmra.mxu0 %v428
    %v1920 = vpop.f32.mrf.mxu0
    %v1921 = vadd.f32 %v1832, %v1920
    %v1922 = vpop.f32.mrf.mxu0
    %v1923 = vadd.f32 %v1834, %v1922
    %1924 = vmatmul.bf16.gmra.mxu0 %v431
    %v1925 = vpop.f32.mrf.mxu0
    %v1926 = vadd.f32 %v1837, %v1925
    %v1927 = vpop.f32.mrf.mxu0
    %v1928 = vadd.f32 %v1839, %v1927
    %1929 = vmatmul.bf16.gmra.mxu0 %v434
    %v1930 = vpop.f32.mrf.mxu0
    %v1931 = vadd.f32 %v1842, %v1930
    %v1932 = vpop.f32.mrf.mxu0
    %v1933 = vadd.f32 %v1844, %v1932
    %1934 = vmatmul.bf16.gmra.mxu0 %v437
    %v1935 = vpop.f32.mrf.mxu0
    %v1936 = vadd.f32 %v1847, %v1935
    %v1937 = vpop.f32.mrf.mxu0
    %v1938 = vadd.f32 %v1849, %v1937
    %1939 = vmatmul.bf16.gmra.mxu0 %v440
    %v1940 = vpop.f32.mrf.mxu0
    %v1941 = vadd.f32 %v1852, %v1940
    %v1942 = vpop.f32.mrf.mxu0
    %v1943 = vadd.f32 %v1854, %v1942
    %1944 = vmatmul.bf16.gmra.mxu0 %v443
    %v1945 = vpop.f32.mrf.mxu0
    %v1946 = vadd.f32 %v1857, %v1945
    %v1947 = vpop.f32.mrf.mxu0
    %v1948 = vadd.f32 %v1859, %v1947
    %1949 = vmatmul.bf16.gmra.mxu0 %v446
    %v1950 = vpop.f32.mrf.mxu0
    %v1951 = vadd.f32 %v1862, %v1950
    %v1952 = vpop.f32.mrf.mxu0
    %v1953 = vadd.f32 %v1864, %v1952
    %1954 = vmatmul.bf16.gmra.mxu0 %v449
    %v1955 = vpop.f32.mrf.mxu0
    %v1956 = vadd.f32 %v1867, %v1955
    %v1957 = vpop.f32.mrf.mxu0
    %v1958 = vadd.f32 %v1869, %v1957
    %1959 = vdwg.mxu0
    %v1960 = vrot.slane %v1881, 1
    %v1961 = vrot.slane %v1883, 1
    %v1962 = vrot.slane %v1886, 1
    %v1963 = vrot.slane %v1888, 1
    %v1964 = vrot.slane %v1891, 1
    %v1965 = vrot.slane %v1893, 1
    %v1966 = vrot.slane %v1896, 1
    %v1967 = vrot.slane %v1898, 1
    %v1968 = vrot.slane %v1901, 1
    %v1969 = vrot.slane %v1903, 1
    %v1970 = vrot.slane %v1906, 1
    %v1971 = vrot.slane %v1908, 1
    %v1972 = vrot.slane %v1911, 1
    %v1973 = vrot.slane %v1913, 1
    %v1974 = vrot.slane %v1916, 1
    %v1975 = vrot.slane %v1918, 1
    %v1976 = vrot.slane %v1921, 1
    %v1977 = vrot.slane %v1923, 1
    %v1978 = vrot.slane %v1926, 1
    %v1979 = vrot.slane %v1928, 1
    %v1980 = vrot.slane %v1931, 1
    %v1981 = vrot.slane %v1933, 1
    %v1982 = vrot.slane %v1936, 1
    %v1983 = vrot.slane %v1938, 1
    %v1984 = vrot.slane %v1941, 1
    %v1985 = vrot.slane %v1943, 1
    %v1986 = vrot.slane %v1946, 1
    %v1987 = vrot.slane %v1948, 1
    %v1988 = vrot.slane %v1951, 1
    %v1989 = vrot.slane %v1953, 1
    %v1990 = vrot.slane %v1956, 1
    %v1991 = vrot.slane %v1958, 1
    %vm1992 = vcmp.lt.s32.totalorder %v942, 7
    %v1993 = vsel %vm1992, %v1990, %v1991
    %v1994 = vsel %vm1992, %v1989, %v1990
    %v1995 = vsel %vm1992, %v1988, %v1989
    %v1996 = vsel %vm1992, %v1987, %v1988
    %v1997 = vsel %vm1992, %v1986, %v1987
    %v1998 = vsel %vm1992, %v1985, %v1986
    %v1999 = vsel %vm1992, %v1984, %v1985
    %v2000 = vsel %vm1992, %v1983, %v1984
    %v2001 = vsel %vm1992, %v1982, %v1983
    %v2002 = vsel %vm1992, %v1981, %v1982
    %v2003 = vsel %vm1992, %v1980, %v1981
    %v2004 = vsel %vm1992, %v1979, %v1980
    %v2005 = vsel %vm1992, %v1978, %v1979
    %v2006 = vsel %vm1992, %v1977, %v1978
    %v2007 = vsel %vm1992, %v1976, %v1977
    %v2008 = vsel %vm1992, %v1975, %v1976
    %v2009 = vsel %vm1992, %v1974, %v1975
    %v2010 = vsel %vm1992, %v1973, %v1974
    %v2011 = vsel %vm1992, %v1972, %v1973
    %v2012 = vsel %vm1992, %v1971, %v1972
    %v2013 = vsel %vm1992, %v1970, %v1971
    %v2014 = vsel %vm1992, %v1969, %v1970
    %v2015 = vsel %vm1992, %v1968, %v1969
    %v2016 = vsel %vm1992, %v1967, %v1968
    %v2017 = vsel %vm1992, %v1966, %v1967
    %v2018 = vsel %vm1992, %v1965, %v1966
    %v2019 = vsel %vm1992, %v1964, %v1965
    %v2020 = vsel %vm1992, %v1963, %v1964
    %v2021 = vsel %vm1992, %v1962, %v1963
    %v2022 = vsel %vm1992, %v1961, %v1962
    %v2023 = vsel %vm1992, %v1960, %v1961
    %v2024 = vsel %vm1992, %v1991, %v1960
    %v2025 = vadd.f32 %v1468, %v2023
    %v2026 = vadd.f32 %v1469, %v2022
    %v2027 = vadd.f32 %v1470, %v2021
    %v2028 = vadd.f32 %v1471, %v2020
    %v2029 = vadd.f32 %v1472, %v2019
    %v2030 = vadd.f32 %v1473, %v2018
    %v2031 = vadd.f32 %v1474, %v2017
    %v2032 = vadd.f32 %v1475, %v2016
    %v2033 = vadd.f32 %v1476, %v2015
    %v2034 = vadd.f32 %v1477, %v2014
    %v2035 = vadd.f32 %v1478, %v2013
    %v2036 = vadd.f32 %v1479, %v2012
    %v2037 = vadd.f32 %v1480, %v2011
    %v2038 = vadd.f32 %v1481, %v2010
    %v2039 = vadd.f32 %v1482, %v2009
    %v2040 = vadd.f32 %v1483, %v2008
    %v2041 = vadd.f32 %v1484, %v2007
    %v2042 = vadd.f32 %v1485, %v2006
    %v2043 = vadd.f32 %v1486, %v2005
    %v2044 = vadd.f32 %v1487, %v2004
    %v2045 = vadd.f32 %v1488, %v2003
    %v2046 = vadd.f32 %v1489, %v2002
    %v2047 = vadd.f32 %v1490, %v2001
    %v2048 = vadd.f32 %v1491, %v2000
    %v2049 = vadd.f32 %v1492, %v1999
    %v2050 = vadd.f32 %v1493, %v1998
    %v2051 = vadd.f32 %v1494, %v1997
    %v2052 = vadd.f32 %v1495, %v1996
    %v2053 = vadd.f32 %v1496, %v1995
    %v2054 = vadd.f32 %v1497, %v1994
    %v2055 = vadd.f32 %v1498, %v1993
    %v2056 = vadd.f32 %v1499, %v2024
    %vm2089 = vcmask 1046528
    %v2090 = vrot.slane %v2025, 1
    %v2091 = vrot.slane %v2026, 1
    %v2092 = vsel %vm2089, %v2090, %v2091
    %v2093 = vrot.slane %v2027, 1
    %v2094 = vrot.slane %v2028, 1
    %v2095 = vsel %vm2089, %v2093, %v2094
    %v2096 = vrot.slane %v2029, 1
    %v2097 = vrot.slane %v2030, 1
    %v2098 = vsel %vm2089, %v2096, %v2097
    %v2099 = vrot.slane %v2031, 1
    %v2100 = vrot.slane %v2032, 1
    %v2101 = vsel %vm2089, %v2099, %v2100
    %v2102 = vrot.slane %v2033, 1
    %v2103 = vrot.slane %v2034, 1
    %v2104 = vsel %vm2089, %v2102, %v2103
    %v2105 = vrot.slane %v2035, 1
    %v2106 = vrot.slane %v2036, 1
    %v2107 = vsel %vm2089, %v2105, %v2106
    %v2108 = vrot.slane %v2037, 1
    %v2109 = vrot.slane %v2038, 1
    %v2110 = vsel %vm2089, %v2108, %v2109
    %v2111 = vrot.slane %v2039, 1
    %v2112 = vrot.slane %v2040, 1
    %v2113 = vsel %vm2089, %v2111, %v2112
    %v2114 = vrot.slane %v2041, 1
    %v2115 = vrot.slane %v2042, 1
    %v2116 = vsel %vm2089, %v2114, %v2115
    %v2117 = vrot.slane %v2043, 1
    %v2118 = vrot.slane %v2044, 1
    %v2119 = vsel %vm2089, %v2117, %v2118
    %v2120 = vrot.slane %v2045, 1
    %v2121 = vrot.slane %v2046, 1
    %v2122 = vsel %vm2089, %v2120, %v2121
    %v2123 = vrot.slane %v2047, 1
    %v2124 = vrot.slane %v2048, 1
    %v2125 = vsel %vm2089, %v2123, %v2124
    %v2126 = vrot.slane %v2049, 1
    %v2127 = vrot.slane %v2050, 1
    %v2128 = vsel %vm2089, %v2126, %v2127
    %v2129 = vrot.slane %v2051, 1
    %v2130 = vrot.slane %v2052, 1
    %v2131 = vsel %vm2089, %v2129, %v2130
    %v2132 = vrot.slane %v2053, 1
    %v2133 = vrot.slane %v2054, 1
    %v2134 = vsel %vm2089, %v2132, %v2133
    %v2135 = vrot.slane %v2055, 1
    %v2136 = vrot.slane %v2056, 1
    %v2137 = vsel %vm2089, %v2135, %v2136
    %v2154 = vld [vmem:[%s5] sm:$0x1]
    %v2156 = vperm.slane %v2154, 0
    %v2158 = vadd.f32 %v2092, %v2156
    %v2159 = vadd.f32 %v2095, %v2156
    %v2160 = vadd.f32 %v2098, %v2156
    %v2161 = vadd.f32 %v2101, %v2156
    %v2162 = vadd.f32 %v2104, %v2156
    %v2163 = vadd.f32 %v2107, %v2156
    %v2164 = vadd.f32 %v2110, %v2156
    %v2165 = vadd.f32 %v2113, %v2156
    %v2166 = vadd.f32 %v2116, %v2156
    %v2167 = vadd.f32 %v2119, %v2156
    %v2168 = vadd.f32 %v2122, %v2156
    %v2169 = vadd.f32 %v2125, %v2156
    %v2170 = vadd.f32 %v2128, %v2156
    %v2171 = vadd.f32 %v2131, %v2156
    %v2172 = vadd.f32 %v2134, %v2156
    %v2173 = vadd.f32 %v2137, %v2156
    %v2174 = vmax.f32 %v2158, 0.0
    %v2175 = vmax.f32 %v2159, 0.0
    %v2176 = vmax.f32 %v2160, 0.0
    %v2177 = vmax.f32 %v2161, 0.0
    %v2178 = vmax.f32 %v2162, 0.0
    %v2179 = vmax.f32 %v2163, 0.0
    %v2180 = vmax.f32 %v2164, 0.0
    %v2181 = vmax.f32 %v2165, 0.0
    %v2182 = vmax.f32 %v2166, 0.0
    %v2183 = vmax.f32 %v2167, 0.0
    %v2184 = vmax.f32 %v2168, 0.0
    %v2185 = vmax.f32 %v2169, 0.0
    %v2186 = vmax.f32 %v2170, 0.0
    %v2187 = vmax.f32 %v2171, 0.0
    %v2188 = vmax.f32 %v2172, 0.0
    %v2189 = vmax.f32 %v2173, 0.0
    %v2190 = vpack.c.bf16 %v2175, %v2174
    %v2191 = vpack.c.bf16 %v2177, %v2176
    %v2192 = vpack.c.bf16 %v2179, %v2178
    %v2193 = vpack.c.bf16 %v2181, %v2180
    %v2194 = vpack.c.bf16 %v2183, %v2182
    %v2195 = vpack.c.bf16 %v2185, %v2184
    %v2196 = vpack.c.bf16 %v2187, %v2186
    %v2197 = vpack.c.bf16 %v2189, %v2188
    %v2198 = vld [vmem:[#allocation9] sm:$0xf]
    %v2199 = vld [vmem:[#allocation9 + $0x4] sm:$0xf]
    %v2200 = vld [vmem:[#allocation9 + $0x8] sm:$0xf]
    %v2201 = vld [vmem:[#allocation9 + $0xc] sm:$0xf]
    %v2202 = vld [vmem:[#allocation9 + $0x10] sm:$0xf]
    %v2203 = vld [vmem:[#allocation9 + $0x14] sm:$0xf]
    %v2204 = vld [vmem:[#allocation9 + $0x18] sm:$0xf]
    %v2205 = vld [vmem:[#allocation9 + $0x1c] sm:$0xf]
    %v2206 = vld [vmem:[#allocation9 + $0x20] sm:$0xf]
    %v2207 = vld [vmem:[#allocation9 + $0x24] sm:$0xf]
    %v2208 = vld [vmem:[#allocation9 + $0x28] sm:$0xf]
    %v2209 = vld [vmem:[#allocation9 + $0x2c] sm:$0xf]
    %v2210 = vld [vmem:[#allocation9 + $0x30] sm:$0xf]
    %v2211 = vld [vmem:[#allocation9 + $0x34] sm:$0xf]
    %v2212 = vld [vmem:[#allocation9 + $0x38] sm:$0xf]
    %v2213 = vld [vmem:[#allocation9 + $0x3c] sm:$0xf]
    %v2214 = vld [vmem:[%s6] sm:$0x1]
    %v2216 = vperm.slane %v2214, 0
    %v2234 = vunpack.c.l.b16 %v2198
    %v2235 = vunpack.c.l.b16 %v2199
    %v2236 = vunpack.c.l.b16 %v2200
    %v2237 = vunpack.c.l.b16 %v2201
    %v2238 = vunpack.c.l.b16 %v2202
    %v2239 = vunpack.c.l.b16 %v2203
    %v2240 = vunpack.c.l.b16 %v2204
    %v2241 = vunpack.c.l.b16 %v2205
    %v2242 = vunpack.c.l.b16 %v2206
    %v2243 = vunpack.c.l.b16 %v2207
    %v2244 = vunpack.c.l.b16 %v2208
    %v2245 = vunpack.c.l.b16 %v2209
    %v2246 = vunpack.c.l.b16 %v2210
    %v2247 = vunpack.c.l.b16 %v2211
    %v2248 = vunpack.c.l.b16 %v2212
    %v2249 = vunpack.c.l.b16 %v2213
    %v2250 = vpack.c.b16 %v2235, %v2234
    %v2251 = vpack.c.b16 %v2237, %v2236
    %v2252 = vpack.c.b16 %v2239, %v2238
    %v2253 = vpack.c.b16 %v2241, %v2240
    %v2254 = vpack.c.b16 %v2243, %v2242
    %v2255 = vpack.c.b16 %v2245, %v2244
    %v2256 = vpack.c.b16 %v2247, %v2246
    %v2257 = vpack.c.b16 %v2249, %v2248
    %2266 = vmatpush.bf16.msra.mxu0 %v2257
    %2267 = vmatpush.bf16.msra.mxu0 %v2256
    %2268 = vmatpush.bf16.msra.mxu0 %v2255
    %2269 = vmatpush.bf16.msra.mxu0 %v2254
    %2270 = vmatpush.bf16.msra.mxu0 %v2253
    %2271 = vmatpush.bf16.msra.mxu0 %v2252
    %2272 = vmatpush.bf16.msra.mxu0 %v2251
    %2273 = vmatpush.bf16.msra.mxu0 %v2250
    %2274 = vmatmul.bf16.gmra.mxu0 %v2190
    %v2275 = vpop.f32.mrf.mxu0
    %v2276 = vadd.f32 %v2216, %v2275
    %v2277 = vpop.f32.mrf.mxu0
    %v2278 = vadd.f32 %v2216, %v2277
    %2279 = vmatmul.bf16.gmra.mxu0 %v2191
    %v2280 = vpop.f32.mrf.mxu0
    %v2281 = vadd.f32 %v2216, %v2280
    %v2282 = vpop.f32.mrf.mxu0
    %v2283 = vadd.f32 %v2216, %v2282
    %2284 = vmatmul.bf16.gmra.mxu0 %v2192
    %v2285 = vpop.f32.mrf.mxu0
    %v2286 = vadd.f32 %v2216, %v2285
    %v2287 = vpop.f32.mrf.mxu0
    %v2288 = vadd.f32 %v2216, %v2287
    %2289 = vmatmul.bf16.gmra.mxu0 %v2193
    %v2290 = vpop.f32.mrf.mxu0
    %v2291 = vadd.f32 %v2216, %v2290
    %v2292 = vpop.f32.mrf.mxu0
    %v2293 = vadd.f32 %v2216, %v2292
    %2294 = vmatmul.bf16.gmra.mxu0 %v2194
    %v2295 = vpop.f32.mrf.mxu0
    %v2296 = vadd.f32 %v2216, %v2295
    %v2297 = vpop.f32.mrf.mxu0
    %v2298 = vadd.f32 %v2216, %v2297
    %2299 = vmatmul.bf16.gmra.mxu0 %v2195
    %v2300 = vpop.f32.mrf.mxu0
    %v2301 = vadd.f32 %v2216, %v2300
    %v2302 = vpop.f32.mrf.mxu0
    %v2303 = vadd.f32 %v2216, %v2302
    %2304 = vmatmul.bf16.gmra.mxu0 %v2196
    %v2305 = vpop.f32.mrf.mxu0
    %v2306 = vadd.f32 %v2216, %v2305
    %v2307 = vpop.f32.mrf.mxu0
    %v2308 = vadd.f32 %v2216, %v2307
    %2309 = vmatmul.bf16.gmra.mxu0 %v2197
    %v2310 = vpop.f32.mrf.mxu0
    %v2311 = vadd.f32 %v2216, %v2310
    %v2312 = vpop.f32.mrf.mxu0
    %v2313 = vadd.f32 %v2216, %v2312
    %2314 = vdwg.mxu0
    %v2315 = vld [vmem:[#allocation3] sm:$0xff]
    %v2316 = vld [vmem:[#allocation3 + $0x8] sm:$0xff]
    %v2317 = vld [vmem:[#allocation3 + $0x10] sm:$0xff]
    %v2318 = vld [vmem:[#allocation3 + $0x18] sm:$0xff]
    %v2319 = vld [vmem:[#allocation3 + $0x20] sm:$0xff]
    %v2320 = vld [vmem:[#allocation3 + $0x28] sm:$0xff]
    %v2321 = vld [vmem:[#allocation3 + $0x30] sm:$0xff]
    %v2322 = vld [vmem:[#allocation3 + $0x38] sm:$0xff]
    %v2323 = vld [vmem:[#allocation3 + $0x40] sm:$0xff]
    %v2324 = vld [vmem:[#allocation3 + $0x48] sm:$0xff]
    %v2325 = vld [vmem:[#allocation3 + $0x50] sm:$0xff]
    %v2326 = vld [vmem:[#allocation3 + $0x58] sm:$0xff]
    %v2327 = vld [vmem:[#allocation3 + $0x60] sm:$0xff]
    %v2328 = vld [vmem:[#allocation3 + $0x68] sm:$0xff]
    %v2329 = vld [vmem:[#allocation3 + $0x70] sm:$0xff]
    %v2330 = vld [vmem:[#allocation3 + $0x78] sm:$0xff]
    %v2331 = vadd.f32 %v2276, %v2315
    %v2332 = vadd.f32 %v2278, %v2316
    %v2333 = vadd.f32 %v2281, %v2317
    %v2334 = vadd.f32 %v2283, %v2318
    %v2335 = vadd.f32 %v2286, %v2319
    %v2336 = vadd.f32 %v2288, %v2320
    %v2337 = vadd.f32 %v2291, %v2321
    %v2338 = vadd.f32 %v2293, %v2322
    %v2339 = vadd.f32 %v2296, %v2323
    %v2340 = vadd.f32 %v2298, %v2324
    %v2341 = vadd.f32 %v2301, %v2325
    %v2342 = vadd.f32 %v2303, %v2326
    %v2343 = vadd.f32 %v2306, %v2327
    %v2344 = vadd.f32 %v2308, %v2328
    %v2345 = vadd.f32 %v2311, %v2329
    %v2346 = vadd.f32 %v2313, %v2330
    %v2347 = vmax.f32 %v2331, 0.0
    %v2348 = vmax.f32 %v2332, 0.0
    %v2349 = vmax.f32 %v2333, 0.0
    %v2350 = vmax.f32 %v2334, 0.0
    %v2351 = vmax.f32 %v2335, 0.0
    %v2352 = vmax.f32 %v2336, 0.0
    %v2353 = vmax.f32 %v2337, 0.0
    %v2354 = vmax.f32 %v2338, 0.0
    %v2355 = vmax.f32 %v2339, 0.0
    %v2356 = vmax.f32 %v2340, 0.0
    %v2357 = vmax.f32 %v2341, 0.0
    %v2358 = vmax.f32 %v2342, 0.0
    %v2359 = vmax.f32 %v2343, 0.0
    %v2360 = vmax.f32 %v2344, 0.0
    %v2361 = vmax.f32 %v2345, 0.0
    %v2362 = vmax.f32 %v2346, 0.0
    %2363 = vst [vmem:[#allocation11] sm:$0xff] %v2347
    %2364 = vst [vmem:[#allocation11 + $0x8] sm:$0xff] %v2348
    %2365 = vst [vmem:[#allocation11 + $0x10] sm:$0xff] %v2349
    %2366 = vst [vmem:[#allocation11 + $0x18] sm:$0xff] %v2350
    %2367 = vst [vmem:[#allocation11 + $0x20] sm:$0xff] %v2351
    %2368 = vst [vmem:[#allocation11 + $0x28] sm:$0xff] %v2352
    %2369 = vst [vmem:[#allocation11 + $0x30] sm:$0xff] %v2353
    %2370 = vst [vmem:[#allocation11 + $0x38] sm:$0xff] %v2354
    %2371 = vst [vmem:[#allocation11 + $0x40] sm:$0xff] %v2355
    %2372 = vst [vmem:[#allocation11 + $0x48] sm:$0xff] %v2356
    %2373 = vst [vmem:[#allocation11 + $0x50] sm:$0xff] %v2357
    %2374 = vst [vmem:[#allocation11 + $0x58] sm:$0xff] %v2358
    %2375 = vst [vmem:[#allocation11 + $0x60] sm:$0xff] %v2359
    %2376 = vst [vmem:[#allocation11 + $0x68] sm:$0xff] %v2360
    %2377 = vst [vmem:[#allocation11 + $0x70] sm:$0xff] %v2361
    %2378 = vst [vmem:[#allocation11 + $0x78] sm:$0xff] %v2362
    // Predicated region
    $region46: #{tpu_custom_call.1} parent=1 // pred_check
      _
    $region47: #{tpu_custom_call.1} parent=1 // pred_check_branch
      %2380 = sbr.rel (0) target = $region49
    $region48: #{tpu_custom_call.1} parent=1 // pred_region
      %2382 = vsyncadd [#allocation5], 0
      %s2383 = sshll.u32 [#allocation11], 4
      %s2384 = int_to_ptr.vmem [resolvable:$true] %s2383
      %s2385 = sshll.u32 %s7, 4
      %s2386 = int_to_ptr.hbm [resolvable:$true] %s2385
      %2391 = dma.vmem_to_hbm [thread:$0]  %s2384, 2048, %s2386, [#allocation5], 128, 128, 8
    $region49: #{tpu_custom_call.1} parent=1 // pred_fallthru
      _
    // Predicated region
    $region50: #{tpu_custom_call.1} parent=1 // pred_check
      _
    $region51: #{tpu_custom_call.1} parent=1 // pred_check_branch
      %2393 = sbr.rel (0) target = $region53
    $region52: #{tpu_custom_call.1} parent=1 // pred_region
      %2395 = dma.done [#allocation5], 2048
    $region53: #{tpu_custom_call.1} parent=1 // pred_fallthru
      _
    %2396 = vsyncpa [#allocation4], 1
    %2397 = vsyncpa [#allocation7], 1
    %2398 = vsyncpa [#allocation10], 1
    %2399 = vsyncpa [#allocation5], 1

</llo_original>
